<compile_context>
chip_gen: v6e
topology: v6e:2x2x1
jax: 0.10.0
libtpu: 0.0.40
codegen_flags: <defaults>
</compile_context>

<pallas_src>
import functools

import jax
import jax.numpy as jnp
from jax import lax
from jax.experimental import pallas as pl
from jax.experimental.pallas import tpu as pltpu

EPS = 1e-5


def conv_bn_kernel(x_ref, w_ref, gamma_ref, beta_ref, o_ref,
                   sum_ref, sumsq_ref, scale_ref, bias_ref, *, m_total):
    # x_ref:     (tm, C)   pixel-row tile, all input channels
    # w_ref:     (C, tk)   input channels x output-channel tile (constant over phase/m)
    # gamma_ref: (1, tk), beta_ref: (1, tk)
    # o_ref:     (tm, tk)
    # scratch:   sum/sumsq/scale/bias, each (1, tk) f32, persistent across grid steps
    phase = pl.program_id(1)
    m_idx = pl.program_id(2)

    # 1x1 conv for this (pixel tile, K tile) -- recomputed in both phases (MXU work is
    # ~3-10x cheaper than an HBM round trip of y).
    y = jnp.dot(x_ref[...], w_ref[...], preferred_element_type=jnp.float32)

    # ---- phase 0: accumulate per-channel statistics over the M tiles ----
    @pl.when(jnp.logical_and(phase == 0, m_idx == 0))
    def _():
        sum_ref[...] = jnp.zeros_like(sum_ref)
        sumsq_ref[...] = jnp.zeros_like(sumsq_ref)

    @pl.when(phase == 0)
    def _():
        sum_ref[...] += jnp.sum(y, axis=0, keepdims=True)          # XLU sublane reduce
        sumsq_ref[...] += jnp.sum(y * y, axis=0, keepdims=True)

    # ---- phase 1: fold BN into per-channel scale/bias (once per K tile), normalize ----
    @pl.when(jnp.logical_and(phase == 1, m_idx == 0))
    def _():
        inv_m = 1.0 / m_total                                      # true pixel count
        mean = sum_ref[...] * inv_m
        var = sumsq_ref[...] * inv_m - mean * mean                 # biased var (BN fwd)
        scale = gamma_ref[...] * lax.rsqrt(var + EPS)
        scale_ref[...] = scale
        bias_ref[...] = beta_ref[...] - mean * scale

    @pl.when(phase == 1)
    def _():
        o_ref[...] = (y * scale_ref[...] + bias_ref[...]).astype(o_ref.dtype)


def conv2d_1x1_batchnorm(x_nchw, w_kc, gamma, beta, *, tm=512, tk=256):
    """x_nchw: (N, C, H, W) f32; w_kc: (K, C) f32 (1x1 conv weight squeezed);
    gamma, beta: (K,) f32. Returns (N, K, H, W) f32 (BN training-mode forward)."""
    N, C, H, W = x_nchw.shape
    K = w_kc.shape[0]
    M = N * H * W

    assert C % 128 == 0 and K % tk == 0 and tk % 128 == 0 and tm % 8 == 0

    # NCHW -> (M, C): pixel rows, channel cols.
    x2d = jnp.transpose(x_nchw, (0, 2, 3, 1)).reshape(M, C)

    # Pad the pixel dim to a multiple of tm with zero rows (stats stay exact, see header).
    nm = pl.cdiv(M, tm)
    m_pad = nm * tm
    if m_pad != M:
        x2d = jnp.pad(x2d, ((0, m_pad - M), (0, 0)))

    w2d = jnp.transpose(w_kc, (1, 0))        # (C, K)
    gamma2d = gamma.reshape(1, K)
    beta2d = beta.reshape(1, K)

    nk = K // tk
    kernel = functools.partial(conv_bn_kernel, m_total=float(M))

    cost = pl.CostEstimate(
        flops=2 * (2 * m_pad * C * K),                              # matmul in both phases
        transcendentals=K,                                          # rsqrt per channel
        bytes_accessed=(2 * nk * m_pad * C + C * K + m_pad * K + 2 * K) * 4,
    )

    out2d = pl.pallas_call(
        kernel,
        out_shape=jax.ShapeDtypeStruct((m_pad, K), jnp.float32),
        grid_spec=pltpu.PrefetchScalarGridSpec(
            num_scalar_prefetch=0,
            grid=(nk, 2, nm),                                       # (K tiles, phase, M tiles)
            in_specs=[
                pl.BlockSpec((tm, C), lambda k, p, m: (m, 0)),      # streaming pixel tiles
                pl.BlockSpec((C, tk), lambda k, p, m: (0, k)),      # weight tile, resident per k
                pl.BlockSpec((1, tk), lambda k, p, m: (0, k)),      # gamma tile
                pl.BlockSpec((1, tk), lambda k, p, m: (0, k)),      # beta tile
            ],
            # phase 0: constant block index (no write-back); phase 1: one block per m.
            out_specs=pl.BlockSpec((tm, tk), lambda k, p, m: (m * p, k)),
            scratch_shapes=[pltpu.VMEM((1, tk), jnp.float32)] * 4,  # sum, sumsq, scale, bias
        ),
        compiler_params=pltpu.CompilerParams(
            dimension_semantics=("parallel", "arbitrary", "arbitrary"),
            vmem_limit_bytes=32 * 1024 * 1024,
        ),
        cost_estimate=cost,
    )(x2d, w2d, gamma2d, beta2d)

    out2d = out2d[:M]
    # (M, K) -> (N, K, H, W)
    return jnp.transpose(out2d.reshape(N, H, W, K), (0, 3, 1, 2))


def reference(x_nchw, w_kc, gamma, beta):
    N, C, H, W = x_nchw.shape
    K = w_kc.shape[0]
    x2d = jnp.transpose(x_nchw, (0, 2, 3, 1)).reshape(-1, C)
    y = x2d @ w_kc.T                                                # (M, K)
    mean = jnp.mean(y, axis=0, keepdims=True)
    var = jnp.mean((y - mean) ** 2, axis=0, keepdims=True)
    out = (y - mean) / jnp.sqrt(var + EPS) * gamma[None, :] + beta[None, :]
    return jnp.transpose(out.reshape(N, H, W, K), (0, 3, 1, 2))


if __name__ == "__main__":
    # Exact module shapes: Conv2d(256 -> 1024, 1x1) on (1, 256, 28, 28) -- already small.
    N, C, H, W, K = 1, 256, 28, 28, 1024

    key = jax.random.PRNGKey(0)
    kx, kw, kg, kb = jax.random.split(key, 4)
    x = jax.random.normal(kx, (N, C, H, W), dtype=jnp.float32)
    # Conv2d weight (K, C, 1, 1) squeezed to (K, C); deterministic synthetic init.
    w = jax.random.normal(kw, (K, C), dtype=jnp.float32) * 0.05
    gamma = 1.0 + 0.1 * jax.random.normal(kg, (K,), dtype=jnp.float32)
    beta = 0.1 * jax.random.normal(kb, (K,), dtype=jnp.float32)

    out = conv2d_1x1_batchnorm(x, w, gamma, beta)
    out = jax.block_until_ready(out)

    ref = reference(x, w, gamma, beta)
    assert out.shape == (N, K, H, W)
    max_err = jnp.max(jnp.abs(out - ref))
    assert jnp.allclose(out, ref, atol=2e-4, rtol=2e-4), f"mismatch vs reference (max abs err {max_err})"

    # TODO(synk): BatchNorm2d running_mean/var momentum updates (training-state side
    # effect) are not materialized; only the returned tensor of M.forward is implemented.
    print("KERNEL_OK")
</pallas_src>

<mosaic_0001>
module attributes {stable_mosaic.version = 11 : i64} {
  func.func @conv_bn_kernel(%arg0: i32, %arg1: i32, %arg2: i32, %arg3: memref<512x256xf32, #tpu.memory_space<vmem>>, %arg4: memref<256x256xf32, #tpu.memory_space<vmem>>, %arg5: memref<1x256xf32, #tpu.memory_space<vmem>>, %arg6: memref<1x256xf32, #tpu.memory_space<vmem>>, %arg7: memref<512x256xf32, #tpu.memory_space<vmem>>, %arg8: memref<1x256xf32, #tpu.memory_space<vmem>>, %arg9: memref<1x256xf32, #tpu.memory_space<vmem>>, %arg10: memref<1x256xf32, #tpu.memory_space<vmem>>, %arg11: memref<1x256xf32, #tpu.memory_space<vmem>>) attributes {dimension_semantics = [#tpu.dimension_semantics<parallel>, #tpu.dimension_semantics<arbitrary>, #tpu.dimension_semantics<arbitrary>], iteration_bounds = array<i64: 4, 2, 2>, scalar_prefetch = 0 : i64, scratch_operands = 4 : i64, tpu.core_type = #tpu.core_type<tc>, window_params = [{transform_indices = @transform_0, window_bounds = array<i64: 512, 256>}, {transform_indices = @transform_1, window_bounds = array<i64: 256, 256>}, {transform_indices = @transform_2, window_bounds = array<i64: 1, 256>}, {transform_indices = @transform_3, window_bounds = array<i64: 1, 256>}, {transform_indices = @transform_4, window_bounds = array<i64: 512, 256>}]} {
    %c0 = arith.constant 0 : index
    %c0_0 = arith.constant 0 : index
    %0 = vector.load %arg3[%c0, %c0_0] : memref<512x256xf32, #tpu.memory_space<vmem>>, vector<512x256xf32>
    %c0_1 = arith.constant 0 : index
    %c0_2 = arith.constant 0 : index
    %1 = vector.load %arg4[%c0_1, %c0_2] : memref<256x256xf32, #tpu.memory_space<vmem>>, vector<256x256xf32>
    %cst = arith.constant dense<0.000000e+00> : vector<512x256xf32>
    %2 = tpu.matmul %0, %1, %cst {dimension_numbers = #tpu.dot_dimension_numbers<[1], [0], [0], [1], [0, 0, 1, 1], [], []>} : vector<512x256xf32>, vector<256x256xf32>, vector<512x256xf32> -> vector<512x256xf32>
    %c0_i32 = arith.constant 0 : i32
    %3 = arith.cmpi eq, %arg1, %c0_i32 : i32
    %c0_i32_3 = arith.constant 0 : i32
    %4 = arith.cmpi eq, %arg2, %c0_i32_3 : i32
    %5 = arith.andi %3, %4 : i1
    %6 = arith.extui %5 : i1 to i32
    %c0_i32_4 = arith.constant 0 : i32
    %7 = arith.cmpi ne, %6, %c0_i32_4 : i32
    scf.if %7 {
      %cst_11 = arith.constant 0.000000e+00 : f32
      %19 = vector.broadcast %cst_11 : f32 to vector<1x256xf32>
      %c0_12 = arith.constant 0 : index
      %c0_13 = arith.constant 0 : index
      %20 = vector.load %arg8[%c0_12, %c0_13] : memref<1x256xf32, #tpu.memory_space<vmem>>, vector<1x256xf32>
      tpu.vector_store %arg8[%c0_12, %c0_13], %19 {strides = array<i32>} : memref<1x256xf32, #tpu.memory_space<vmem>>, vector<1x256xf32>,
      %cst_14 = arith.constant 0.000000e+00 : f32
      %21 = vector.broadcast %cst_14 : f32 to vector<1x256xf32>
      %c0_15 = arith.constant 0 : index
      %c0_16 = arith.constant 0 : index
      %22 = vector.load %arg9[%c0_15, %c0_16] : memref<1x256xf32, #tpu.memory_space<vmem>>, vector<1x256xf32>
      tpu.vector_store %arg9[%c0_15, %c0_16], %21 {strides = array<i32>} : memref<1x256xf32, #tpu.memory_space<vmem>>, vector<1x256xf32>,
    } else {
    }
    %c0_i32_5 = arith.constant 0 : i32
    %8 = arith.cmpi eq, %arg1, %c0_i32_5 : i32
    %9 = arith.extui %8 : i1 to i32
    %c0_i32_6 = arith.constant 0 : i32
    %10 = arith.cmpi ne, %9, %c0_i32_6 : i32
    scf.if %10 {
      %c0_11 = arith.constant 0 : index
      %c0_12 = arith.constant 0 : index
      %19 = vector.load %arg8[%c0_11, %c0_12] : memref<1x256xf32, #tpu.memory_space<vmem>>, vector<1x256xf32>
      %cst_13 = arith.constant dense<0.000000e+00> : vector<256xf32>
      %20 = vector.multi_reduction <add>, %2, %cst_13 [0] : vector<512x256xf32> to vector<256xf32>
      %21 = vector.shape_cast %20 : vector<256xf32> to vector<1x256xf32>
      %22 = arith.addf %19, %21 : vector<1x256xf32>
      %c0_14 = arith.constant 0 : index
      %c0_15 = arith.constant 0 : index
      %23 = vector.load %arg8[%c0_14, %c0_15] : memref<1x256xf32, #tpu.memory_space<vmem>>, vector<1x256xf32>
      tpu.vector_store %arg8[%c0_14, %c0_15], %22 {strides = array<i32>} : memref<1x256xf32, #tpu.memory_space<vmem>>, vector<1x256xf32>,
      %c0_16 = arith.constant 0 : index
      %c0_17 = arith.constant 0 : index
      %24 = vector.load %arg9[%c0_16, %c0_17] : memref<1x256xf32, #tpu.memory_space<vmem>>, vector<1x256xf32>
      %25 = arith.mulf %2, %2 : vector<512x256xf32>
      %cst_18 = arith.constant dense<0.000000e+00> : vector<256xf32>
      %26 = vector.multi_reduction <add>, %25, %cst_18 [0] : vector<512x256xf32> to vector<256xf32>
      %27 = vector.shape_cast %26 : vector<256xf32> to vector<1x256xf32>
      %28 = arith.addf %24, %27 : vector<1x256xf32>
      %c0_19 = arith.constant 0 : index
      %c0_20 = arith.constant 0 : index
      %29 = vector.load %arg9[%c0_19, %c0_20] : memref<1x256xf32, #tpu.memory_space<vmem>>, vector<1x256xf32>
      tpu.vector_store %arg9[%c0_19, %c0_20], %28 {strides = array<i32>} : memref<1x256xf32, #tpu.memory_space<vmem>>, vector<1x256xf32>,
    } else {
    }
    %c1_i32 = arith.constant 1 : i32
    %11 = arith.cmpi eq, %arg1, %c1_i32 : i32
    %c0_i32_7 = arith.constant 0 : i32
    %12 = arith.cmpi eq, %arg2, %c0_i32_7 : i32
    %13 = arith.andi %11, %12 : i1
    %14 = arith.extui %13 : i1 to i32
    %c0_i32_8 = arith.constant 0 : i32
    %15 = arith.cmpi ne, %14, %c0_i32_8 : i32
    scf.if %15 {
      %c0_11 = arith.constant 0 : index
      %c0_12 = arith.constant 0 : index
      %19 = vector.load %arg8[%c0_11, %c0_12] : memref<1x256xf32, #tpu.memory_space<vmem>>, vector<1x256xf32>
      %cst_13 = arith.constant 0.00127551018 : f32
      %20 = vector.broadcast %cst_13 : f32 to vector<1x256xf32>
      %21 = arith.mulf %19, %20 : vector<1x256xf32>
      %c0_14 = arith.constant 0 : index
      %c0_15 = arith.constant 0 : index
      %22 = vector.load %arg9[%c0_14, %c0_15] : memref<1x256xf32, #tpu.memory_space<vmem>>, vector<1x256xf32>
      %cst_16 = arith.constant 0.00127551018 : f32
      %23 = vector.broadcast %cst_16 : f32 to vector<1x256xf32>
      %24 = arith.mulf %22, %23 : vector<1x256xf32>
      %25 = arith.mulf %21, %21 : vector<1x256xf32>
      %26 = arith.subf %24, %25 : vector<1x256xf32>
      %c0_17 = arith.constant 0 : index
      %c0_18 = arith.constant 0 : index
      %27 = vector.load %arg5[%c0_17, %c0_18] : memref<1x256xf32, #tpu.memory_space<vmem>>, vector<1x256xf32>
      %cst_19 = arith.constant 9.99999974E-6 : f32
      %28 = vector.broadcast %cst_19 : f32 to vector<1x256xf32>
      %29 = arith.addf %26, %28 : vector<1x256xf32>
      %30 = math.rsqrt %29 : vector<1x256xf32>
      %31 = arith.mulf %27, %30 : vector<1x256xf32>
      %c0_20 = arith.constant 0 : index
      %c0_21 = arith.constant 0 : index
      %32 = vector.load %arg10[%c0_20, %c0_21] : memref<1x256xf32, #tpu.memory_space<vmem>>, vector<1x256xf32>
      tpu.vector_store %arg10[%c0_20, %c0_21], %31 {strides = array<i32>} : memref<1x256xf32, #tpu.memory_space<vmem>>, vector<1x256xf32>,
      %c0_22 = arith.constant 0 : index
      %c0_23 = arith.constant 0 : index
      %33 = vector.load %arg6[%c0_22, %c0_23] : memref<1x256xf32, #tpu.memory_space<vmem>>, vector<1x256xf32>
      %34 = arith.mulf %21, %31 : vector<1x256xf32>
      %35 = arith.subf %33, %34 : vector<1x256xf32>
      %c0_24 = arith.constant 0 : index
      %c0_25 = arith.constant 0 : index
      %36 = vector.load %arg11[%c0_24, %c0_25] : memref<1x256xf32, #tpu.memory_space<vmem>>, vector<1x256xf32>
      tpu.vector_store %arg11[%c0_24, %c0_25], %35 {strides = array<i32>} : memref<1x256xf32, #tpu.memory_space<vmem>>, vector<1x256xf32>,
    } else {
    }
    %c1_i32_9 = arith.constant 1 : i32
    %16 = arith.cmpi eq, %arg1, %c1_i32_9 : i32
    %17 = arith.extui %16 : i1 to i32
    %c0_i32_10 = arith.constant 0 : i32
    %18 = arith.cmpi ne, %17, %c0_i32_10 : i32
    scf.if %18 {
      %c0_11 = arith.constant 0 : index
      %c0_12 = arith.constant 0 : index
      %19 = vector.load %arg10[%c0_11, %c0_12] : memref<1x256xf32, #tpu.memory_space<vmem>>, vector<1x256xf32>
      %20 = vector.broadcast %19 : vector<1x256xf32> to vector<512x256xf32>
      %21 = arith.mulf %2, %20 : vector<512x256xf32>
      %c0_13 = arith.constant 0 : index
      %c0_14 = arith.constant 0 : index
      %22 = vector.load %arg11[%c0_13, %c0_14] : memref<1x256xf32, #tpu.memory_space<vmem>>, vector<1x256xf32>
      %23 = vector.broadcast %22 : vector<1x256xf32> to vector<512x256xf32>
      %24 = arith.addf %21, %23 : vector<512x256xf32>
      %c0_15 = arith.constant 0 : index
      %c0_16 = arith.constant 0 : index
      %25 = vector.load %arg7[%c0_15, %c0_16] : memref<512x256xf32, #tpu.memory_space<vmem>>, vector<512x256xf32>
      tpu.vector_store %arg7[%c0_15, %c0_16], %24 {strides = array<i32>} : memref<512x256xf32, #tpu.memory_space<vmem>>, vector<512x256xf32>,
    } else {
    }
    return
  }
  func.func @transform_0(%arg0: i32, %arg1: i32, %arg2: i32) -> (i32, i32) {
    %c0_i32 = arith.constant 0 : i32
    %c0_i32_0 = arith.constant 0 : i32
    return %arg2, %c0_i32 : i32, i32
  }
  func.func @transform_1(%arg0: i32, %arg1: i32, %arg2: i32) -> (i32, i32) {
    %c0_i32 = arith.constant 0 : i32
    %c0_i32_0 = arith.constant 0 : i32
    return %c0_i32, %arg0 : i32, i32
  }
  func.func @transform_2(%arg0: i32, %arg1: i32, %arg2: i32) -> (i32, i32) {
    %c0_i32 = arith.constant 0 : i32
    %c0_i32_0 = arith.constant 0 : i32
    return %c0_i32, %arg0 : i32, i32
  }
  func.func @transform_3(%arg0: i32, %arg1: i32, %arg2: i32) -> (i32, i32) {
    %c0_i32 = arith.constant 0 : i32
    %c0_i32_0 = arith.constant 0 : i32
    return %c0_i32, %arg0 : i32, i32
  }
  func.func @transform_4(%arg0: i32, %arg1: i32, %arg2: i32) -> (i32, i32) {
    %0 = arith.muli %arg2, %arg1 : i32
    %c0_i32 = arith.constant 0 : i32
    return %0, %arg0 : i32, i32
  }
}

</mosaic_0001>

<llo_original>
// kernel: tpu_custom_call.1
$region0: #{tpu_custom_call.1}
  #allocation0 [shape = 'u32[]', space=smem, size = 0x4, offset = 0x4, fixed_abs, tag = 'smem constant byte address 0x4 - core index']
  #allocation1 [shape = 'u32[144,128]{1,0:T(1,128)}', space=vmem, size = 0x12000, scoped, tag = 'internal scratch']
  #allocation2 [shape = 'f32[1,256]{1,0:T(1,128)}', space=vmem, size = 0x400, scoped, tag = 'scratch operand']
  #allocation3 [shape = 'f32[1,256]{1,0:T(1,128)}', space=vmem, size = 0x400, scoped, tag = 'scratch operand']
  #allocation4 [shape = 'f32[1,256]{1,0:T(1,128)}', space=vmem, size = 0x400, scoped, tag = 'scratch operand']
  #allocation5 [shape = 'f32[1,256]{1,0:T(1,128)}', space=vmem, size = 0x400, scoped, tag = 'scratch operand']
  %s0 = inlined_call_operand.hbm [shape: f32[1024,256], index: 0, kind: input, shape index: {}]
  %s1 = inlined_call_operand.hbm [shape: f32[256,1024], index: 1, kind: input, shape index: {}]
  %s2 = inlined_call_operand.hbm [shape: f32[1,1024], index: 2, kind: input, shape index: {}]
  %s3 = inlined_call_operand.hbm [shape: f32[1,1024], index: 3, kind: input, shape index: {}]
  %s4 = inlined_call_operand.hbm [shape: f32[1024,1024], index: 4, kind: output, shape index: {}]
  %s5 = sld [smem:[#allocation0]]
  $region81: #{tpu_custom_call.1} parent=0
    _
  %s7 = ssub.s32 1, %s5
  %s8 = scalar_select 0, %s7, %s5
  $region1: #{tpu_custom_call.1} parent=0
    #allocation6 [shape = 'u8[1048576]{0}', space=vmem, size = 0x100000, scoped, tag = 'input window, operand 0']
    #allocation7 [shape = 's32[2]{0}', space=sflag, size = 0x8, scoped, tag = 'scoped memory for tpu_custom_call.1']
    #allocation8 [shape = 's32[2]{0}', space=sflag, size = 0x8, scoped, tag = 'scoped memory for tpu_custom_call.1']
    #allocation9 [shape = 'u8[524288]{0}', space=vmem, size = 0x80000, scoped, tag = 'input window, operand 1']
    #allocation10 [shape = 's32[2]{0}', space=sflag, size = 0x8, scoped, tag = 'scoped memory for tpu_custom_call.1']
    #allocation11 [shape = 'u8[2048]{0}', space=vmem, size = 0x800, scoped, tag = 'input window, operand 2']
    #allocation12 [shape = 'u8[2048]{0}', space=vmem, size = 0x800, scoped, tag = 'input window, operand 3']
    #allocation13 [shape = 's32[2]{0}', space=sflag, size = 0x8, scoped, tag = 'scoped memory for tpu_custom_call.1']
    #allocation14 [shape = 'u8[1048576]{0}', space=vmem, size = 0x100000, scoped, tag = 'output window, operand 0']
    %9 = vsyncpa [#allocation7], 0
    %s10 = scalar_lea.sflag [#allocation7], 1
    %11 = vsyncpa %s10, 0
    %12 = vsyncpa [#allocation10], 0
    %s13 = scalar_lea.sflag [#allocation10], 1
    %14 = vsyncpa %s13, 0
    %15 = vsyncpa [#allocation13], 0
    %s16 = scalar_lea.sflag [#allocation13], 1
    %17 = vsyncpa %s16, 0
    %18 = vsyncpa [#allocation8], 0
    %s19 = scalar_lea.sflag [#allocation8], 1
    %20 = vsyncpa %s19, 0
    loop: start=0, step=1, limit=18
    $region2: #{tpu_custom_call.1} parent=1 // loop_pre_header
      _
    $region3: #{tpu_custom_call.1} parent=1 // loop_header
      %s22 = sphi 0, %s26
      %p23 = scmp.ge.s32.totalorder %s22, 18
      %s29 = sphi 0, %s48
      %s30 = sphi 0, %s44
      %s31 = sphi 0, %s40
      %s32 = sphi 0, %s29
      %s33 = sphi 0, %s30
      %s34 = sphi 0, %s31
      %s35 = sphi 0, %s32
      %s36 = sphi 0, %s33
      %s37 = sphi 0, %s34
      %s51 = sphi 0, %s53
      %s54 = sphi 0, %s51
      %s55 = sphi 0, %s54
      %s71 = sphi 0, %s55
      %s77 = sphi 0, %s79
      %s80 = sphi 0, %s77
      %s81 = sphi 0, %s80
      %s97 = sphi 0, %s81
      %s103 = sphi 0, %s105
      %s106 = sphi 0, %s103
      %s107 = sphi 0, %s106
      %s123 = sphi 0, %s107
      %s129 = sphi 0, %s131
      %s132 = sphi 0, %s129
      %s133 = sphi 0, %s132
      %s149 = sphi 0, %s133
      %s159 = sphi 0, %s161
      %s162 = sphi 0, %s159
      %s163 = sphi 0, %s162
      %s179 = sphi 0, %s163
    $region4: #{tpu_custom_call.1} parent=1 // loop_header_branch
      %25 = sbr.rel (%p23) target = $region8
    $region5: #{tpu_custom_call.1} parent=1 // loop_body
      %s27 = ssub.s32 %s22, 1
      %s28 = ssub.s32 %s22, 2
      %s38 = sadd.s32 1, %s31
      %p39 = scmp.ge.s32.totalorder %s38, 2
      %s40 = scalar_select %p39, 0, %s38
      %s41 = sadd.s32 1, %s30
      %s42 = scalar_select %p39, %s41, %s30
      %p43 = scmp.ge.s32.totalorder %s42, 2
      %s44 = scalar_select %p43, 0, %s42
      %s45 = sadd.s32 1, %s29
      %s46 = scalar_select %p43, %s45, %s29
      %p47 = scmp.ge.s32.totalorder %s46, 4
      %s48 = scalar_select %p47, 0, %s46
      %s49 = ssub.s32 %s31, %s40
      %p50 = scmp.eq.s32.totalorder %s49, 0
      %s52 = sadd.s32 %s51, 1
      %s53 = scalar_select %p50, %s51, %s52
      %p56 = pneg %p50
      %p57 = scmp.eq.s32.totalorder %s22, 15
      %p58 = por %p56, %p57
      %p59 = scmp.ne.s32.totalorder %s51, %s54
      %p60 = scmp.eq.s32.totalorder %s22, 0
      %p61 = por %p59, %p60
      %p62 = scmp.ne.s32.totalorder %s51, %s54
      %p63 = scmp.eq.s32.totalorder %s27, 15
      %p64 = por %p62, %p63
      %p65 = scmp.ne.s32.totalorder %s54, %s55
      %p66 = scmp.eq.s32.totalorder %s27, 0
      %p67 = por %p65, %p66
      %p68 = scmp.ne.s32.totalorder %s54, %s55
      %p69 = scmp.eq.s32.totalorder %s28, 15
      %p70 = por %p68, %p69
      %p72 = scmp.ne.s32.totalorder %s55, %s71
      %p73 = scmp.eq.s32.totalorder %s28, 0
      %p74 = por %p72, %p73
      %s75 = ssub.s32 %s29, %s48
      %p76 = scmp.eq.s32.totalorder %s75, 0
      %s78 = sadd.s32 %s77, 1
      %s79 = scalar_select %p76, %s77, %s78
      %p82 = pneg %p76
      %p83 = scmp.eq.s32.totalorder %s22, 15
      %p84 = por %p82, %p83
      %p85 = scmp.ne.s32.totalorder %s77, %s80
      %p86 = scmp.eq.s32.totalorder %s22, 0
      %p87 = por %p85, %p86
      %p88 = scmp.ne.s32.totalorder %s77, %s80
      %p89 = scmp.eq.s32.totalorder %s27, 15
      %p90 = por %p88, %p89
      %p91 = scmp.ne.s32.totalorder %s80, %s81
      %p92 = scmp.eq.s32.totalorder %s27, 0
      %p93 = por %p91, %p92
      %p94 = scmp.ne.s32.totalorder %s80, %s81
      %p95 = scmp.eq.s32.totalorder %s28, 15
      %p96 = por %p94, %p95
      %p98 = scmp.ne.s32.totalorder %s81, %s97
      %p99 = scmp.eq.s32.totalorder %s28, 0
      %p100 = por %p98, %p99
      %s101 = ssub.s32 %s29, %s48
      %p102 = scmp.eq.s32.totalorder %s101, 0
      %s104 = sadd.s32 %s103, 1
      %s105 = scalar_select %p102, %s103, %s104
      %p108 = pneg %p102
      %p109 = scmp.eq.s32.totalorder %s22, 15
      %p110 = por %p108, %p109
      %p111 = scmp.ne.s32.totalorder %s103, %s106
      %p112 = scmp.eq.s32.totalorder %s22, 0
      %p113 = por %p111, %p112
      %p114 = scmp.ne.s32.totalorder %s103, %s106
      %p115 = scmp.eq.s32.totalorder %s27, 15
      %p116 = por %p114, %p115
      %p117 = scmp.ne.s32.totalorder %s106, %s107
      %p118 = scmp.eq.s32.totalorder %s27, 0
      %p119 = por %p117, %p118
      %p120 = scmp.ne.s32.totalorder %s106, %s107
      %p121 = scmp.eq.s32.totalorder %s28, 15
      %p122 = por %p120, %p121
      %p124 = scmp.ne.s32.totalorder %s107, %s123
      %p125 = scmp.eq.s32.totalorder %s28, 0
      %p126 = por %p124, %p125
      %s127 = ssub.s32 %s29, %s48
      %p128 = scmp.eq.s32.totalorder %s127, 0
      %s130 = sadd.s32 %s129, 1
      %s131 = scalar_select %p128, %s129, %s130
      %p134 = pneg %p128
      %p135 = scmp.eq.s32.totalorder %s22, 15
      %p136 = por %p134, %p135
      %p137 = scmp.ne.s32.totalorder %s129, %s132
      %p138 = scmp.eq.s32.totalorder %s22, 0
      %p139 = por %p137, %p138
      %p140 = scmp.ne.s32.totalorder %s129, %s132
      %p141 = scmp.eq.s32.totalorder %s27, 15
      %p142 = por %p140, %p141
      %p143 = scmp.ne.s32.totalorder %s132, %s133
      %p144 = scmp.eq.s32.totalorder %s27, 0
      %p145 = por %p143, %p144
      %p146 = scmp.ne.s32.totalorder %s132, %s133
      %p147 = scmp.eq.s32.totalorder %s28, 15
      %p148 = por %p146, %p147
      %p150 = scmp.ne.s32.totalorder %s133, %s149
      %p151 = scmp.eq.s32.totalorder %s28, 0
      %p152 = por %p150, %p151
      %s153 = smul.u32 %s31, %s30
      %s154 = smul.u32 %s40, %s44
      %s155 = ssub.s32 %s153, %s154
      %s156 = ssub.s32 %s29, %s48
      %s157 = sor.u32 %s155, %s156
      %p158 = scmp.eq.s32.totalorder %s157, 0
      %s160 = sadd.s32 %s159, 1
      %s161 = scalar_select %p158, %s159, %s160
      %p164 = pneg %p158
      %p165 = scmp.eq.s32.totalorder %s22, 15
      %p166 = por %p164, %p165
      %p167 = scmp.ne.s32.totalorder %s159, %s162
      %p168 = scmp.eq.s32.totalorder %s22, 0
      %p169 = por %p167, %p168
      %p170 = scmp.ne.s32.totalorder %s159, %s162
      %p171 = scmp.eq.s32.totalorder %s27, 15
      %p172 = por %p170, %p171
      %p173 = scmp.ne.s32.totalorder %s162, %s163
      %p174 = scmp.eq.s32.totalorder %s27, 0
      %p175 = por %p173, %p174
      %p176 = scmp.ne.s32.totalorder %s162, %s163
      %p177 = scmp.eq.s32.totalorder %s28, 15
      %p178 = por %p176, %p177
      %p180 = scmp.ne.s32.totalorder %s163, %s179
      %p181 = scmp.eq.s32.totalorder %s28, 0
      %p182 = por %p180, %p181
      %p183 = scmp.le.s32.totalorder 1, %s22
      %p184 = scmp.lt.s32.totalorder %s22, 17
      %p185 = pnand %p183, %p184
      %p186 = pneg %p185
      // Predicated region
      $region9: #{tpu_custom_call.1} parent=5 // pred_check
        _
      $region10: #{tpu_custom_call.1} parent=5 // pred_check_branch
        %188 = sbr.rel (%p185) target = $region12
      $region11: #{tpu_custom_call.1} parent=5 // pred_region
        %s189 = ssub.s32 %s22, 1
      $region12: #{tpu_custom_call.1} parent=5 // pred_fallthru
        _
      %p190 = scmp.lt.s32.totalorder %s22, 16
      // Predicated region
      $region13: #{tpu_custom_call.1} parent=5 // pred_check
        %p191 = pneg %p190
      $region14: #{tpu_custom_call.1} parent=5 // pred_check_branch
        %193 = sbr.rel (%p191) target = $region16
      $region15: #{tpu_custom_call.1} parent=5 // pred_region
        // Predicated region
        $region17: #{tpu_custom_call.1} parent=15 // pred_check
          %p194 = pneg %p61
        $region18: #{tpu_custom_call.1} parent=15 // pred_check_branch
          %196 = sbr.rel (%p194) target = $region20
        $region19: #{tpu_custom_call.1} parent=15 // pred_region
          %s197 = sand.u32 %s51, 1
          %s198 = scalar_lea.sflag [#allocation7], %s197
          %s199 = sand.u32 %s51, 1
          %s200 = smul.addr %s199, 1024
          %s201 = scalar_lea.vmem [#allocation6], %s200
          %s202 = smul.u32 64, %s31
          %s204 = ssub.s32 16384, 16384
          %205 = vsyncadd %s198, %s204
          %s206 = smul.addr %s202, 2
          %s207 = smul.addr %s206, 128
          %s208 = scalar_lea.hbm %s0, %s207
          %s209 = sshll.u32 %s201, 4
          %s210 = int_to_ptr.vmem [resolvable:$true] %s209
          %215 = dma.hbm_to_vmem [thread:$0]  %s208, 16384, %s210, %s198, 256, 256, 16
        $region20: #{tpu_custom_call.1} parent=15 // pred_fallthru
          _
        // Predicated region
        $region21: #{tpu_custom_call.1} parent=15 // pred_check
          %p216 = pneg %p87
        $region22: #{tpu_custom_call.1} parent=15 // pred_check_branch
          %218 = sbr.rel (%p216) target = $region24
        $region23: #{tpu_custom_call.1} parent=15 // pred_region
          %s219 = sand.u32 %s22, 1
          %s220 = scalar_lea.sflag [#allocation10], %s219
          %s221 = sand.u32 %s77, 1
          %s222 = smul.addr %s221, 512
          %s223 = scalar_lea.vmem [#allocation9], %s222
          %s224 = smul.u32 2, %s29
          %s226 = ssub.s32 8192, 8192
          %227 = vsyncadd %s220, %s226
          %s228 = smul.addr %s224, 128
          %s229 = scalar_lea.hbm %s1, %s228
          %s230 = sshll.u32 %s223, 4
          %s231 = int_to_ptr.vmem [resolvable:$true] %s230
          %236 = dma.hbm_to_vmem [thread:$0]  %s229, 8192, %s231, %s220, 1024, 256, 16
        $region24: #{tpu_custom_call.1} parent=15 // pred_fallthru
          _
        // Predicated region
        $region25: #{tpu_custom_call.1} parent=15 // pred_check
          %p237 = pneg %p113
        $region26: #{tpu_custom_call.1} parent=15 // pred_check_branch
          %239 = sbr.rel (%p237) target = $region28
        $region27: #{tpu_custom_call.1} parent=15 // pred_region
          %s240 = sand.u32 %s22, 1
          %s241 = scalar_lea.sflag [#allocation10], %s240
          %s242 = sand.u32 %s103, 1
          %s243 = smul.addr %s242, 2
          %s244 = scalar_lea.vmem [#allocation11], %s243
          %s245 = smul.u32 2, %s29
          %s247 = ssub.s32 32, 32
          %248 = vsyncadd %s241, %s247
          %s249 = smul.addr %s245, 16
          %s250 = scalar_lea.hbm %s2, %s249
          %s252 = sshll.u32 %s244, 4
          %s253 = int_to_ptr.vmem [resolvable:$true] %s252
          %255 = dma.hbm_to_vmem [thread:$0]  %s250, 32, %s253, %s241
        $region28: #{tpu_custom_call.1} parent=15 // pred_fallthru
          _
        // Predicated region
        $region29: #{tpu_custom_call.1} parent=15 // pred_check
          %p256 = pneg %p139
        $region30: #{tpu_custom_call.1} parent=15 // pred_check_branch
          %258 = sbr.rel (%p256) target = $region32
        $region31: #{tpu_custom_call.1} parent=15 // pred_region
          %s259 = sand.u32 %s129, 1
          %s260 = scalar_lea.sflag [#allocation13], %s259
          %s261 = sand.u32 %s129, 1
          %s262 = smul.addr %s261, 2
          %s263 = scalar_lea.vmem [#allocation12], %s262
          %s264 = smul.u32 2, %s29
          %s266 = ssub.s32 32, 32
          %267 = vsyncadd %s260, %s266
          %s268 = smul.addr %s264, 16
          %s269 = scalar_lea.hbm %s3, %s268
          %s271 = sshll.u32 %s263, 4
          %s272 = int_to_ptr.vmem [resolvable:$true] %s271
          %274 = dma.hbm_to_vmem [thread:$0]  %s269, 32, %s272, %s260
        $region32: #{tpu_custom_call.1} parent=15 // pred_fallthru
          _
      $region16: #{tpu_custom_call.1} parent=5 // pred_fallthru
        _
      %p275 = scmp.le.s32.totalorder 1, %s22
      %p276 = scmp.lt.s32.totalorder %s22, 17
      %p277 = pnand %p275, %p276
      %p278 = pneg %p277
      // Predicated region
      $region33: #{tpu_custom_call.1} parent=5 // pred_check
        _
      $region34: #{tpu_custom_call.1} parent=5 // pred_check_branch
        %280 = sbr.rel (%p277) target = $region36
      $region35: #{tpu_custom_call.1} parent=5 // pred_region
        %s281 = ssub.s32 %s22, 1
        %s282 = sand.u32 %s54, 1
        %s283 = scalar_lea.sflag [#allocation7], %s282
        %s284 = sand.u32 %s54, 1
        %s285 = smul.addr %s284, 1024
        %s286 = scalar_lea.vmem [#allocation6], %s285
        // Predicated region
        $region37: #{tpu_custom_call.1} parent=35 // pred_check
          %p287 = pneg %p67
        $region38: #{tpu_custom_call.1} parent=35 // pred_check_branch
          %289 = sbr.rel (%p287) target = $region40
        $region39: #{tpu_custom_call.1} parent=35 // pred_region
          %290 = dma.done %s283, 16384
        $region40: #{tpu_custom_call.1} parent=35 // pred_fallthru
          _
        %s291 = sand.u32 %s27, 1
        %s292 = scalar_lea.sflag [#allocation10], %s291
        %s293 = sand.u32 %s80, 1
        %s294 = smul.addr %s293, 512
        %s295 = scalar_lea.vmem [#allocation9], %s294
        // Predicated region
        $region41: #{tpu_custom_call.1} parent=35 // pred_check
          %p296 = pneg %p93
        $region42: #{tpu_custom_call.1} parent=35 // pred_check_branch
          %298 = sbr.rel (%p296) target = $region44
        $region43: #{tpu_custom_call.1} parent=35 // pred_region
          %299 = dma.done %s292, 8192
        $region44: #{tpu_custom_call.1} parent=35 // pred_fallthru
          _
        %s300 = sand.u32 %s27, 1
        %s301 = scalar_lea.sflag [#allocation10], %s300
        %s302 = sand.u32 %s106, 1
        %s303 = smul.addr %s302, 2
        %s304 = scalar_lea.vmem [#allocation11], %s303
        // Predicated region
        $region45: #{tpu_custom_call.1} parent=35 // pred_check
          %p305 = pneg %p119
        $region46: #{tpu_custom_call.1} parent=35 // pred_check_branch
          %307 = sbr.rel (%p305) target = $region48
        $region47: #{tpu_custom_call.1} parent=35 // pred_region
          %308 = dma.done %s301, 32
        $region48: #{tpu_custom_call.1} parent=35 // pred_fallthru
          _
        %s309 = sand.u32 %s132, 1
        %s310 = scalar_lea.sflag [#allocation13], %s309
        %s311 = sand.u32 %s132, 1
        %s312 = smul.addr %s311, 2
        %s313 = scalar_lea.vmem [#allocation12], %s312
        // Predicated region
        $region49: #{tpu_custom_call.1} parent=35 // pred_check
          %p314 = pneg %p145
        $region50: #{tpu_custom_call.1} parent=35 // pred_check_branch
          %316 = sbr.rel (%p314) target = $region52
        $region51: #{tpu_custom_call.1} parent=35 // pred_region
          %317 = dma.done %s310, 32
        $region52: #{tpu_custom_call.1} parent=35 // pred_fallthru
          _
        %s318 = sand.u32 %s54, 1
        %s319 = scalar_lea.sflag [#allocation7], %s318
        %s320 = sand.u32 %s54, 1
        %s321 = smul.addr %s320, 1024
        %s322 = scalar_lea.vmem [#allocation6], %s321
        %p323 = pneg %p67
        %p324 = pneg %p64
        %s325 = sand.u32 %s27, 1
        %s326 = scalar_lea.sflag [#allocation10], %s325
        %s327 = sand.u32 %s80, 1
        %s328 = smul.addr %s327, 512
        %s329 = scalar_lea.vmem [#allocation9], %s328
        %p330 = pneg %p93
        %p331 = pneg %p90
        %s332 = sand.u32 %s27, 1
        %s333 = scalar_lea.sflag [#allocation10], %s332
        %s334 = sand.u32 %s106, 1
        %s335 = smul.addr %s334, 2
        %s336 = scalar_lea.vmem [#allocation11], %s335
        %p337 = pneg %p119
        %p338 = pneg %p116
        %s339 = sand.u32 %s132, 1
        %s340 = scalar_lea.sflag [#allocation13], %s339
        %s341 = sand.u32 %s132, 1
        %s342 = smul.addr %s341, 2
        %s343 = scalar_lea.vmem [#allocation12], %s342
        %p344 = pneg %p145
        %p345 = pneg %p142
        %p346 = pneg %p175
        %p347 = pneg %p172
        %s348 = sand.u32 %s162, 1
        %s349 = scalar_lea.sflag [#allocation8], %s348
        %s350 = sand.u32 %s162, 1
        %s351 = smul.addr %s350, 1024
        %s352 = scalar_lea.vmem [#allocation14], %s351
        %s353 = smul.u32 64, %s34
        %s354 = smul.u32 2, %s32
        %s355 = smul.u32 2, %s32
        %s356 = smul.u32 2, %s32
        %s357 = smul.u32 %s34, %s33
        %s358 = smul.u32 64, %s357
        %s359 = smul.u32 2, %s32
        %v360 = vld [vmem:[%s286] sm:$0xff]
        %v361 = vld [vmem:[%s286 + $0x8] sm:$0xff]
        %v362 = vld [vmem:[%s286 + $0x10] sm:$0xff]
        %v363 = vld [vmem:[%s286 + $0x18] sm:$0xff]
        %v364 = vld [vmem:[%s286 + $0x20] sm:$0xff]
        %v365 = vld [vmem:[%s286 + $0x28] sm:$0xff]
        %v366 = vld [vmem:[%s286 + $0x30] sm:$0xff]
        %v367 = vld [vmem:[%s286 + $0x38] sm:$0xff]
        %v368 = vld [vmem:[%s286 + $0x40] sm:$0xff]
        %v369 = vld [vmem:[%s286 + $0x48] sm:$0xff]
        %v370 = vld [vmem:[%s286 + $0x50] sm:$0xff]
        %v371 = vld [vmem:[%s286 + $0x58] sm:$0xff]
        %v372 = vld [vmem:[%s286 + $0x60] sm:$0xff]
        %v373 = vld [vmem:[%s286 + $0x68] sm:$0xff]
        %v374 = vld [vmem:[%s286 + $0x70] sm:$0xff]
        %v375 = vld [vmem:[%s286 + $0x78] sm:$0xff]
        %v376 = vld [vmem:[%s286 + $0x80] sm:$0xff]
        %v377 = vld [vmem:[%s286 + $0x88] sm:$0xff]
        %v378 = vld [vmem:[%s286 + $0x90] sm:$0xff]
        %v379 = vld [vmem:[%s286 + $0x98] sm:$0xff]
        %v380 = vld [vmem:[%s286 + $0xa0] sm:$0xff]
        %v381 = vld [vmem:[%s286 + $0xa8] sm:$0xff]
        %v382 = vld [vmem:[%s286 + $0xb0] sm:$0xff]
        %v383 = vld [vmem:[%s286 + $0xb8] sm:$0xff]
        %v384 = vld [vmem:[%s286 + $0xc0] sm:$0xff]
        %v385 = vld [vmem:[%s286 + $0xc8] sm:$0xff]
        %v386 = vld [vmem:[%s286 + $0xd0] sm:$0xff]
        %v387 = vld [vmem:[%s286 + $0xd8] sm:$0xff]
        %v388 = vld [vmem:[%s286 + $0xe0] sm:$0xff]
        %v389 = vld [vmem:[%s286 + $0xe8] sm:$0xff]
        %v390 = vld [vmem:[%s286 + $0xf0] sm:$0xff]
        %v391 = vld [vmem:[%s286 + $0xf8] sm:$0xff]
        %v392 = vld [vmem:[%s286 + $0x100] sm:$0xff]
        %v393 = vld [vmem:[%s286 + $0x108] sm:$0xff]
        %v394 = vld [vmem:[%s286 + $0x110] sm:$0xff]
        %v395 = vld [vmem:[%s286 + $0x118] sm:$0xff]
        %v396 = vld [vmem:[%s286 + $0x120] sm:$0xff]
        %v397 = vld [vmem:[%s286 + $0x128] sm:$0xff]
        %v398 = vld [vmem:[%s286 + $0x130] sm:$0xff]
        %v399 = vld [vmem:[%s286 + $0x138] sm:$0xff]
        %v400 = vld [vmem:[%s286 + $0x140] sm:$0xff]
        %v401 = vld [vmem:[%s286 + $0x148] sm:$0xff]
        %v402 = vld [vmem:[%s286 + $0x150] sm:$0xff]
        %v403 = vld [vmem:[%s286 + $0x158] sm:$0xff]
        %v404 = vld [vmem:[%s286 + $0x160] sm:$0xff]
        %v405 = vld [vmem:[%s286 + $0x168] sm:$0xff]
        %v406 = vld [vmem:[%s286 + $0x170] sm:$0xff]
        %v407 = vld [vmem:[%s286 + $0x178] sm:$0xff]
        %v408 = vld [vmem:[%s286 + $0x180] sm:$0xff]
        %v409 = vld [vmem:[%s286 + $0x188] sm:$0xff]
        %v410 = vld [vmem:[%s286 + $0x190] sm:$0xff]
        %v411 = vld [vmem:[%s286 + $0x198] sm:$0xff]
        %v412 = vld [vmem:[%s286 + $0x1a0] sm:$0xff]
        %v413 = vld [vmem:[%s286 + $0x1a8] sm:$0xff]
        %v414 = vld [vmem:[%s286 + $0x1b0] sm:$0xff]
        %v415 = vld [vmem:[%s286 + $0x1b8] sm:$0xff]
        %v416 = vld [vmem:[%s286 + $0x1c0] sm:$0xff]
        %v417 = vld [vmem:[%s286 + $0x1c8] sm:$0xff]
        %v418 = vld [vmem:[%s286 + $0x1d0] sm:$0xff]
        %v419 = vld [vmem:[%s286 + $0x1d8] sm:$0xff]
        %v420 = vld [vmem:[%s286 + $0x1e0] sm:$0xff]
        %v421 = vld [vmem:[%s286 + $0x1e8] sm:$0xff]
        %v422 = vld [vmem:[%s286 + $0x1f0] sm:$0xff]
        %v423 = vld [vmem:[%s286 + $0x1f8] sm:$0xff]
        %v424 = vld [vmem:[%s286 + $0x200] sm:$0xff]
        %v425 = vld [vmem:[%s286 + $0x208] sm:$0xff]
        %v426 = vld [vmem:[%s286 + $0x210] sm:$0xff]
        %v427 = vld [vmem:[%s286 + $0x218] sm:$0xff]
        %v428 = vld [vmem:[%s286 + $0x220] sm:$0xff]
        %v429 = vld [vmem:[%s286 + $0x228] sm:$0xff]
        %v430 = vld [vmem:[%s286 + $0x230] sm:$0xff]
        %v431 = vld [vmem:[%s286 + $0x238] sm:$0xff]
        %v432 = vld [vmem:[%s286 + $0x240] sm:$0xff]
        %v433 = vld [vmem:[%s286 + $0x248] sm:$0xff]
        %v434 = vld [vmem:[%s286 + $0x250] sm:$0xff]
        %v435 = vld [vmem:[%s286 + $0x258] sm:$0xff]
        %v436 = vld [vmem:[%s286 + $0x260] sm:$0xff]
        %v437 = vld [vmem:[%s286 + $0x268] sm:$0xff]
        %v438 = vld [vmem:[%s286 + $0x270] sm:$0xff]
        %v439 = vld [vmem:[%s286 + $0x278] sm:$0xff]
        %v440 = vld [vmem:[%s286 + $0x280] sm:$0xff]
        %v441 = vld [vmem:[%s286 + $0x288] sm:$0xff]
        %v442 = vld [vmem:[%s286 + $0x290] sm:$0xff]
        %v443 = vld [vmem:[%s286 + $0x298] sm:$0xff]
        %v444 = vld [vmem:[%s286 + $0x2a0] sm:$0xff]
        %v445 = vld [vmem:[%s286 + $0x2a8] sm:$0xff]
        %v446 = vld [vmem:[%s286 + $0x2b0] sm:$0xff]
        %v447 = vld [vmem:[%s286 + $0x2b8] sm:$0xff]
        %v448 = vld [vmem:[%s286 + $0x2c0] sm:$0xff]
        %v449 = vld [vmem:[%s286 + $0x2c8] sm:$0xff]
        %v450 = vld [vmem:[%s286 + $0x2d0] sm:$0xff]
        %v451 = vld [vmem:[%s286 + $0x2d8] sm:$0xff]
        %v452 = vld [vmem:[%s286 + $0x2e0] sm:$0xff]
        %v453 = vld [vmem:[%s286 + $0x2e8] sm:$0xff]
        %v454 = vld [vmem:[%s286 + $0x2f0] sm:$0xff]
        %v455 = vld [vmem:[%s286 + $0x2f8] sm:$0xff]
        %v456 = vld [vmem:[%s286 + $0x300] sm:$0xff]
        %v457 = vld [vmem:[%s286 + $0x308] sm:$0xff]
        %v458 = vld [vmem:[%s286 + $0x310] sm:$0xff]
        %v459 = vld [vmem:[%s286 + $0x318] sm:$0xff]
        %v460 = vld [vmem:[%s286 + $0x320] sm:$0xff]
        %v461 = vld [vmem:[%s286 + $0x328] sm:$0xff]
        %v462 = vld [vmem:[%s286 + $0x330] sm:$0xff]
        %v463 = vld [vmem:[%s286 + $0x338] sm:$0xff]
        %v464 = vld [vmem:[%s286 + $0x340] sm:$0xff]
        %v465 = vld [vmem:[%s286 + $0x348] sm:$0xff]
        %v466 = vld [vmem:[%s286 + $0x350] sm:$0xff]
        %v467 = vld [vmem:[%s286 + $0x358] sm:$0xff]
        %v468 = vld [vmem:[%s286 + $0x360] sm:$0xff]
        %v469 = vld [vmem:[%s286 + $0x368] sm:$0xff]
        %v470 = vld [vmem:[%s286 + $0x370] sm:$0xff]
        %v471 = vld [vmem:[%s286 + $0x378] sm:$0xff]
        %v472 = vld [vmem:[%s286 + $0x380] sm:$0xff]
        %v473 = vld [vmem:[%s286 + $0x388] sm:$0xff]
        %v474 = vld [vmem:[%s286 + $0x390] sm:$0xff]
        %v475 = vld [vmem:[%s286 + $0x398] sm:$0xff]
        %v476 = vld [vmem:[%s286 + $0x3a0] sm:$0xff]
        %v477 = vld [vmem:[%s286 + $0x3a8] sm:$0xff]
        %v478 = vld [vmem:[%s286 + $0x3b0] sm:$0xff]
        %v479 = vld [vmem:[%s286 + $0x3b8] sm:$0xff]
        %v480 = vld [vmem:[%s286 + $0x3c0] sm:$0xff]
        %v481 = vld [vmem:[%s286 + $0x3c8] sm:$0xff]
        %v482 = vld [vmem:[%s286 + $0x3d0] sm:$0xff]
        %v483 = vld [vmem:[%s286 + $0x3d8] sm:$0xff]
        %v484 = vld [vmem:[%s286 + $0x3e0] sm:$0xff]
        %v485 = vld [vmem:[%s286 + $0x3e8] sm:$0xff]
        %v486 = vld [vmem:[%s286 + $0x3f0] sm:$0xff]
        %v487 = vld [vmem:[%s286 + $0x3f8] sm:$0xff]
        %v488 = vld [vmem:[%s295] sm:$0xff]
        %v489 = vld [vmem:[%s295 + $0x8] sm:$0xff]
        %v490 = vld [vmem:[%s295 + $0x10] sm:$0xff]
        %v491 = vld [vmem:[%s295 + $0x18] sm:$0xff]
        %v492 = vld [vmem:[%s295 + $0x20] sm:$0xff]
        %v493 = vld [vmem:[%s295 + $0x28] sm:$0xff]
        %v494 = vld [vmem:[%s295 + $0x30] sm:$0xff]
        %v495 = vld [vmem:[%s295 + $0x38] sm:$0xff]
        %v496 = vld [vmem:[%s295 + $0x40] sm:$0xff]
        %v497 = vld [vmem:[%s295 + $0x48] sm:$0xff]
        %v498 = vld [vmem:[%s295 + $0x50] sm:$0xff]
        %v499 = vld [vmem:[%s295 + $0x58] sm:$0xff]
        %v500 = vld [vmem:[%s295 + $0x60] sm:$0xff]
        %v501 = vld [vmem:[%s295 + $0x68] sm:$0xff]
        %v502 = vld [vmem:[%s295 + $0x70] sm:$0xff]
        %v503 = vld [vmem:[%s295 + $0x78] sm:$0xff]
        %v504 = vld [vmem:[%s295 + $0x80] sm:$0xff]
        %v505 = vld [vmem:[%s295 + $0x88] sm:$0xff]
        %v506 = vld [vmem:[%s295 + $0x90] sm:$0xff]
        %v507 = vld [vmem:[%s295 + $0x98] sm:$0xff]
        %v508 = vld [vmem:[%s295 + $0xa0] sm:$0xff]
        %v509 = vld [vmem:[%s295 + $0xa8] sm:$0xff]
        %v510 = vld [vmem:[%s295 + $0xb0] sm:$0xff]
        %v511 = vld [vmem:[%s295 + $0xb8] sm:$0xff]
        %v512 = vld [vmem:[%s295 + $0xc0] sm:$0xff]
        %v513 = vld [vmem:[%s295 + $0xc8] sm:$0xff]
        %v514 = vld [vmem:[%s295 + $0xd0] sm:$0xff]
        %v515 = vld [vmem:[%s295 + $0xd8] sm:$0xff]
        %v516 = vld [vmem:[%s295 + $0xe0] sm:$0xff]
        %v517 = vld [vmem:[%s295 + $0xe8] sm:$0xff]
        %v518 = vld [vmem:[%s295 + $0xf0] sm:$0xff]
        %v519 = vld [vmem:[%s295 + $0xf8] sm:$0xff]
        %v520 = vld [vmem:[%s295 + $0x100] sm:$0xff]
        %v521 = vld [vmem:[%s295 + $0x108] sm:$0xff]
        %v522 = vld [vmem:[%s295 + $0x110] sm:$0xff]
        %v523 = vld [vmem:[%s295 + $0x118] sm:$0xff]
        %v524 = vld [vmem:[%s295 + $0x120] sm:$0xff]
        %v525 = vld [vmem:[%s295 + $0x128] sm:$0xff]
        %v526 = vld [vmem:[%s295 + $0x130] sm:$0xff]
        %v527 = vld [vmem:[%s295 + $0x138] sm:$0xff]
        %v528 = vld [vmem:[%s295 + $0x140] sm:$0xff]
        %v529 = vld [vmem:[%s295 + $0x148] sm:$0xff]
        %v530 = vld [vmem:[%s295 + $0x150] sm:$0xff]
        %v531 = vld [vmem:[%s295 + $0x158] sm:$0xff]
        %v532 = vld [vmem:[%s295 + $0x160] sm:$0xff]
        %v533 = vld [vmem:[%s295 + $0x168] sm:$0xff]
        %v534 = vld [vmem:[%s295 + $0x170] sm:$0xff]
        %v535 = vld [vmem:[%s295 + $0x178] sm:$0xff]
        %v536 = vld [vmem:[%s295 + $0x180] sm:$0xff]
        %v537 = vld [vmem:[%s295 + $0x188] sm:$0xff]
        %v538 = vld [vmem:[%s295 + $0x190] sm:$0xff]
        %v539 = vld [vmem:[%s295 + $0x198] sm:$0xff]
        %v540 = vld [vmem:[%s295 + $0x1a0] sm:$0xff]
        %v541 = vld [vmem:[%s295 + $0x1a8] sm:$0xff]
        %v542 = vld [vmem:[%s295 + $0x1b0] sm:$0xff]
        %v543 = vld [vmem:[%s295 + $0x1b8] sm:$0xff]
        %v544 = vld [vmem:[%s295 + $0x1c0] sm:$0xff]
        %v545 = vld [vmem:[%s295 + $0x1c8] sm:$0xff]
        %v546 = vld [vmem:[%s295 + $0x1d0] sm:$0xff]
        %v547 = vld [vmem:[%s295 + $0x1d8] sm:$0xff]
        %v548 = vld [vmem:[%s295 + $0x1e0] sm:$0xff]
        %v549 = vld [vmem:[%s295 + $0x1e8] sm:$0xff]
        %v550 = vld [vmem:[%s295 + $0x1f0] sm:$0xff]
        %v551 = vld [vmem:[%s295 + $0x1f8] sm:$0xff]
        %552 = vmatprep.subr.mxu0 %v519
        %553 = vmatpush1.msra.mxu0 %v518
        %554 = vmatprep.subr.mxu0 %v517
        %555 = vmatpush1.msra.mxu0 %v516
        %556 = vmatprep.subr.mxu0 %v515
        %557 = vmatpush1.msra.mxu0 %v514
        %558 = vmatprep.subr.mxu0 %v513
        %559 = vmatpush1.msra.mxu0 %v512
        %560 = vmatprep.subr.mxu0 %v511
        %561 = vmatpush1.msra.mxu0 %v510
        %562 = vmatprep.subr.mxu0 %v509
        %563 = vmatpush1.msra.mxu0 %v508
        %564 = vmatprep.subr.mxu0 %v507
        %565 = vmatpush1.msra.mxu0 %v506
        %566 = vmatprep.subr.mxu0 %v505
        %567 = vmatpush1.msra.mxu0 %v504
        %568 = vmatprep.subr.mxu0 %v503
        %569 = vmatpush1.msra.mxu0 %v502
        %570 = vmatprep.subr.mxu0 %v501
        %571 = vmatpush1.msra.mxu0 %v500
        %572 = vmatprep.subr.mxu0 %v499
        %573 = vmatpush1.msra.mxu0 %v498
        %574 = vmatprep.subr.mxu0 %v497
        %575 = vmatpush1.msra.mxu0 %v496
        %576 = vmatprep.subr.mxu0 %v495
        %577 = vmatpush1.msra.mxu0 %v494
        %578 = vmatprep.subr.mxu0 %v493
        %579 = vmatpush1.msra.mxu0 %v492
        %580 = vmatprep.subr.mxu0 %v491
        %581 = vmatpush1.msra.mxu0 %v490
        %582 = vmatprep.subr.mxu0 %v489
        %583 = vmatpush1.msra.mxu0 %v488
        %584 = vmatprep.subr.mxu0 %v551
        %585 = vmatpush2.msra.mxu0 %v550
        %586 = vmatprep.subr.mxu0 %v549
        %587 = vmatpush2.msra.mxu0 %v548
        %588 = vmatprep.subr.mxu0 %v547
        %589 = vmatpush2.msra.mxu0 %v546
        %590 = vmatprep.subr.mxu0 %v545
        %591 = vmatpush2.msra.mxu0 %v544
        %592 = vmatprep.subr.mxu0 %v543
        %593 = vmatpush2.msra.mxu0 %v542
        %594 = vmatprep.subr.mxu0 %v541
        %595 = vmatpush2.msra.mxu0 %v540
        %596 = vmatprep.subr.mxu0 %v539
        %597 = vmatpush2.msra.mxu0 %v538
        %598 = vmatprep.subr.mxu0 %v537
        %599 = vmatpush2.msra.mxu0 %v536
        %600 = vmatprep.subr.mxu0 %v535
        %601 = vmatpush2.msra.mxu0 %v534
        %602 = vmatprep.subr.mxu0 %v533
        %603 = vmatpush2.msra.mxu0 %v532
        %604 = vmatprep.subr.mxu0 %v531
        %605 = vmatpush2.msra.mxu0 %v530
        %606 = vmatprep.subr.mxu0 %v529
        %607 = vmatpush2.msra.mxu0 %v528
        %608 = vmatprep.subr.mxu0 %v527
        %609 = vmatpush2.msra.mxu0 %v526
        %610 = vmatprep.subr.mxu0 %v525
        %611 = vmatpush2.msra.mxu0 %v524
        %612 = vmatprep.subr.mxu0 %v523
        %613 = vmatpush2.msra.mxu0 %v522
        %614 = vmatprep.subr.mxu0 %v521
        %615 = vmatpush2.msra.mxu0 %v520
        %616 = vmatprep.mubr.f32.mxu0 %v361
        %617 = vmatmul.mubr.f32.gmra.mxu0 %v360
        %v618 = vpop.f32.mrf.mxu0
        %v619 = vadd.f32 0.0, %v618
        %v620 = vpop.f32.mrf.mxu0
        %v621 = vadd.f32 0.0, %v620
        %622 = vmatprep.mubr.f32.mxu0 %v363
        %623 = vmatmul.mubr.f32.gmra.mxu0 %v362
        %v624 = vpop.f32.mrf.mxu0
        %v625 = vadd.f32 0.0, %v624
        %v626 = vpop.f32.mrf.mxu0
        %v627 = vadd.f32 0.0, %v626
        %628 = vmatprep.mubr.f32.mxu0 %v365
        %629 = vmatmul.mubr.f32.gmra.mxu0 %v364
        %v630 = vpop.f32.mrf.mxu0
        %v631 = vadd.f32 0.0, %v630
        %v632 = vpop.f32.mrf.mxu0
        %v633 = vadd.f32 0.0, %v632
        %634 = vmatprep.mubr.f32.mxu0 %v367
        %635 = vmatmul.mubr.f32.gmra.mxu0 %v366
        %v636 = vpop.f32.mrf.mxu0
        %v637 = vadd.f32 0.0, %v636
        %v638 = vpop.f32.mrf.mxu0
        %v639 = vadd.f32 0.0, %v638
        %640 = vmatprep.mubr.f32.mxu0 %v369
        %641 = vmatmul.mubr.f32.gmra.mxu0 %v368
        %v642 = vpop.f32.mrf.mxu0
        %v643 = vadd.f32 0.0, %v642
        %v644 = vpop.f32.mrf.mxu0
        %v645 = vadd.f32 0.0, %v644
        %646 = vmatprep.mubr.f32.mxu0 %v371
        %647 = vmatmul.mubr.f32.gmra.mxu0 %v370
        %v648 = vpop.f32.mrf.mxu0
        %v649 = vadd.f32 0.0, %v648
        %v650 = vpop.f32.mrf.mxu0
        %v651 = vadd.f32 0.0, %v650
        %652 = vmatprep.mubr.f32.mxu0 %v373
        %653 = vmatmul.mubr.f32.gmra.mxu0 %v372
        %v654 = vpop.f32.mrf.mxu0
        %v655 = vadd.f32 0.0, %v654
        %v656 = vpop.f32.mrf.mxu0
        %v657 = vadd.f32 0.0, %v656
        %658 = vmatprep.mubr.f32.mxu0 %v375
        %659 = vmatmul.mubr.f32.gmra.mxu0 %v374
        %v660 = vpop.f32.mrf.mxu0
        %v661 = vadd.f32 0.0, %v660
        %v662 = vpop.f32.mrf.mxu0
        %v663 = vadd.f32 0.0, %v662
        %664 = vmatprep.mubr.f32.mxu0 %v377
        %665 = vmatmul.mubr.f32.gmra.mxu0 %v376
        %v666 = vpop.f32.mrf.mxu0
        %v667 = vadd.f32 0.0, %v666
        %v668 = vpop.f32.mrf.mxu0
        %v669 = vadd.f32 0.0, %v668
        %670 = vmatprep.mubr.f32.mxu0 %v379
        %671 = vmatmul.mubr.f32.gmra.mxu0 %v378
        %v672 = vpop.f32.mrf.mxu0
        %v673 = vadd.f32 0.0, %v672
        %v674 = vpop.f32.mrf.mxu0
        %v675 = vadd.f32 0.0, %v674
        %676 = vmatprep.mubr.f32.mxu0 %v381
        %677 = vmatmul.mubr.f32.gmra.mxu0 %v380
        %v678 = vpop.f32.mrf.mxu0
        %v679 = vadd.f32 0.0, %v678
        %v680 = vpop.f32.mrf.mxu0
        %v681 = vadd.f32 0.0, %v680
        %682 = vmatprep.mubr.f32.mxu0 %v383
        %683 = vmatmul.mubr.f32.gmra.mxu0 %v382
        %v684 = vpop.f32.mrf.mxu0
        %v685 = vadd.f32 0.0, %v684
        %v686 = vpop.f32.mrf.mxu0
        %v687 = vadd.f32 0.0, %v686
        %688 = vmatprep.mubr.f32.mxu0 %v385
        %689 = vmatmul.mubr.f32.gmra.mxu0 %v384
        %v690 = vpop.f32.mrf.mxu0
        %v691 = vadd.f32 0.0, %v690
        %v692 = vpop.f32.mrf.mxu0
        %v693 = vadd.f32 0.0, %v692
        %694 = vmatprep.mubr.f32.mxu0 %v387
        %695 = vmatmul.mubr.f32.gmra.mxu0 %v386
        %v696 = vpop.f32.mrf.mxu0
        %v697 = vadd.f32 0.0, %v696
        %v698 = vpop.f32.mrf.mxu0
        %v699 = vadd.f32 0.0, %v698
        %700 = vmatprep.mubr.f32.mxu0 %v389
        %701 = vmatmul.mubr.f32.gmra.mxu0 %v388
        %v702 = vpop.f32.mrf.mxu0
        %v703 = vadd.f32 0.0, %v702
        %v704 = vpop.f32.mrf.mxu0
        %v705 = vadd.f32 0.0, %v704
        %706 = vmatprep.mubr.f32.mxu0 %v391
        %707 = vmatmul.mubr.f32.gmra.mxu0 %v390
        %v708 = vpop.f32.mrf.mxu0
        %v709 = vadd.f32 0.0, %v708
        %v710 = vpop.f32.mrf.mxu0
        %v711 = vadd.f32 0.0, %v710
        %712 = vmatprep.mubr.f32.mxu0 %v393
        %713 = vmatmul.mubr.f32.gmra.mxu0 %v392
        %v714 = vpop.f32.mrf.mxu0
        %v715 = vadd.f32 0.0, %v714
        %v716 = vpop.f32.mrf.mxu0
        %v717 = vadd.f32 0.0, %v716
        %718 = vmatprep.mubr.f32.mxu0 %v395
        %719 = vmatmul.mubr.f32.gmra.mxu0 %v394
        %v720 = vpop.f32.mrf.mxu0
        %v721 = vadd.f32 0.0, %v720
        %v722 = vpop.f32.mrf.mxu0
        %v723 = vadd.f32 0.0, %v722
        %724 = vmatprep.mubr.f32.mxu0 %v397
        %725 = vmatmul.mubr.f32.gmra.mxu0 %v396
        %v726 = vpop.f32.mrf.mxu0
        %v727 = vadd.f32 0.0, %v726
        %v728 = vpop.f32.mrf.mxu0
        %v729 = vadd.f32 0.0, %v728
        %730 = vmatprep.mubr.f32.mxu0 %v399
        %731 = vmatmul.mubr.f32.gmra.mxu0 %v398
        %v732 = vpop.f32.mrf.mxu0
        %v733 = vadd.f32 0.0, %v732
        %v734 = vpop.f32.mrf.mxu0
        %v735 = vadd.f32 0.0, %v734
        %736 = vmatprep.mubr.f32.mxu0 %v401
        %737 = vmatmul.mubr.f32.gmra.mxu0 %v400
        %v738 = vpop.f32.mrf.mxu0
        %v739 = vadd.f32 0.0, %v738
        %v740 = vpop.f32.mrf.mxu0
        %v741 = vadd.f32 0.0, %v740
        %742 = vmatprep.mubr.f32.mxu0 %v403
        %743 = vmatmul.mubr.f32.gmra.mxu0 %v402
        %v744 = vpop.f32.mrf.mxu0
        %v745 = vadd.f32 0.0, %v744
        %v746 = vpop.f32.mrf.mxu0
        %v747 = vadd.f32 0.0, %v746
        %748 = vmatprep.mubr.f32.mxu0 %v405
        %749 = vmatmul.mubr.f32.gmra.mxu0 %v404
        %v750 = vpop.f32.mrf.mxu0
        %v751 = vadd.f32 0.0, %v750
        %v752 = vpop.f32.mrf.mxu0
        %v753 = vadd.f32 0.0, %v752
        %754 = vmatprep.mubr.f32.mxu0 %v407
        %755 = vmatmul.mubr.f32.gmra.mxu0 %v406
        %v756 = vpop.f32.mrf.mxu0
        %v757 = vadd.f32 0.0, %v756
        %v758 = vpop.f32.mrf.mxu0
        %v759 = vadd.f32 0.0, %v758
        %760 = vmatprep.mubr.f32.mxu0 %v409
        %761 = vmatmul.mubr.f32.gmra.mxu0 %v408
        %v762 = vpop.f32.mrf.mxu0
        %v763 = vadd.f32 0.0, %v762
        %v764 = vpop.f32.mrf.mxu0
        %v765 = vadd.f32 0.0, %v764
        %766 = vmatprep.mubr.f32.mxu0 %v411
        %767 = vmatmul.mubr.f32.gmra.mxu0 %v410
        %v768 = vpop.f32.mrf.mxu0
        %v769 = vadd.f32 0.0, %v768
        %v770 = vpop.f32.mrf.mxu0
        %v771 = vadd.f32 0.0, %v770
        %772 = vmatprep.mubr.f32.mxu0 %v413
        %773 = vmatmul.mubr.f32.gmra.mxu0 %v412
        %v774 = vpop.f32.mrf.mxu0
        %v775 = vadd.f32 0.0, %v774
        %v776 = vpop.f32.mrf.mxu0
        %v777 = vadd.f32 0.0, %v776
        %778 = vmatprep.mubr.f32.mxu0 %v415
        %779 = vmatmul.mubr.f32.gmra.mxu0 %v414
        %v780 = vpop.f32.mrf.mxu0
        %v781 = vadd.f32 0.0, %v780
        %v782 = vpop.f32.mrf.mxu0
        %v783 = vadd.f32 0.0, %v782
        %784 = vmatprep.mubr.f32.mxu0 %v417
        %785 = vmatmul.mubr.f32.gmra.mxu0 %v416
        %v786 = vpop.f32.mrf.mxu0
        %v787 = vadd.f32 0.0, %v786
        %v788 = vpop.f32.mrf.mxu0
        %v789 = vadd.f32 0.0, %v788
        %790 = vmatprep.mubr.f32.mxu0 %v419
        %791 = vmatmul.mubr.f32.gmra.mxu0 %v418
        %v792 = vpop.f32.mrf.mxu0
        %v793 = vadd.f32 0.0, %v792
        %v794 = vpop.f32.mrf.mxu0
        %v795 = vadd.f32 0.0, %v794
        %796 = vmatprep.mubr.f32.mxu0 %v421
        %797 = vmatmul.mubr.f32.gmra.mxu0 %v420
        %v798 = vpop.f32.mrf.mxu0
        %v799 = vadd.f32 0.0, %v798
        %v800 = vpop.f32.mrf.mxu0
        %v801 = vadd.f32 0.0, %v800
        %802 = vmatprep.mubr.f32.mxu0 %v423
        %803 = vmatmul.mubr.f32.gmra.mxu0 %v422
        %v804 = vpop.f32.mrf.mxu0
        %v805 = vadd.f32 0.0, %v804
        %v806 = vpop.f32.mrf.mxu0
        %v807 = vadd.f32 0.0, %v806
        %808 = vmatprep.mubr.f32.mxu0 %v425
        %809 = vmatmul.mubr.f32.gmra.mxu0 %v424
        %v810 = vpop.f32.mrf.mxu0
        %v811 = vadd.f32 0.0, %v810
        %v812 = vpop.f32.mrf.mxu0
        %v813 = vadd.f32 0.0, %v812
        %814 = vmatprep.mubr.f32.mxu0 %v427
        %815 = vmatmul.mubr.f32.gmra.mxu0 %v426
        %v816 = vpop.f32.mrf.mxu0
        %v817 = vadd.f32 0.0, %v816
        %v818 = vpop.f32.mrf.mxu0
        %v819 = vadd.f32 0.0, %v818
        %820 = vmatprep.mubr.f32.mxu0 %v429
        %821 = vmatmul.mubr.f32.gmra.mxu0 %v428
        %v822 = vpop.f32.mrf.mxu0
        %v823 = vadd.f32 0.0, %v822
        %v824 = vpop.f32.mrf.mxu0
        %v825 = vadd.f32 0.0, %v824
        %826 = vmatprep.mubr.f32.mxu0 %v431
        %827 = vmatmul.mubr.f32.gmra.mxu0 %v430
        %v828 = vpop.f32.mrf.mxu0
        %v829 = vadd.f32 0.0, %v828
        %v830 = vpop.f32.mrf.mxu0
        %v831 = vadd.f32 0.0, %v830
        %832 = vmatprep.mubr.f32.mxu0 %v433
        %833 = vmatmul.mubr.f32.gmra.mxu0 %v432
        %v834 = vpop.f32.mrf.mxu0
        %v835 = vadd.f32 0.0, %v834
        %v836 = vpop.f32.mrf.mxu0
        %v837 = vadd.f32 0.0, %v836
        %838 = vmatprep.mubr.f32.mxu0 %v435
        %839 = vmatmul.mubr.f32.gmra.mxu0 %v434
        %v840 = vpop.f32.mrf.mxu0
        %v841 = vadd.f32 0.0, %v840
        %v842 = vpop.f32.mrf.mxu0
        %v843 = vadd.f32 0.0, %v842
        %844 = vmatprep.mubr.f32.mxu0 %v437
        %845 = vmatmul.mubr.f32.gmra.mxu0 %v436
        %v846 = vpop.f32.mrf.mxu0
        %v847 = vadd.f32 0.0, %v846
        %v848 = vpop.f32.mrf.mxu0
        %v849 = vadd.f32 0.0, %v848
        %850 = vmatprep.mubr.f32.mxu0 %v439
        %851 = vmatmul.mubr.f32.gmra.mxu0 %v438
        %v852 = vpop.f32.mrf.mxu0
        %v853 = vadd.f32 0.0, %v852
        %v854 = vpop.f32.mrf.mxu0
        %v855 = vadd.f32 0.0, %v854
        %856 = vmatprep.mubr.f32.mxu0 %v441
        %857 = vmatmul.mubr.f32.gmra.mxu0 %v440
        %v858 = vpop.f32.mrf.mxu0
        %v859 = vadd.f32 0.0, %v858
        %v860 = vpop.f32.mrf.mxu0
        %v861 = vadd.f32 0.0, %v860
        %862 = vmatprep.mubr.f32.mxu0 %v443
        %863 = vmatmul.mubr.f32.gmra.mxu0 %v442
        %v864 = vpop.f32.mrf.mxu0
        %v865 = vadd.f32 0.0, %v864
        %v866 = vpop.f32.mrf.mxu0
        %v867 = vadd.f32 0.0, %v866
        %868 = vmatprep.mubr.f32.mxu0 %v445
        %869 = vmatmul.mubr.f32.gmra.mxu0 %v444
        %v870 = vpop.f32.mrf.mxu0
        %v871 = vadd.f32 0.0, %v870
        %v872 = vpop.f32.mrf.mxu0
        %v873 = vadd.f32 0.0, %v872
        %874 = vmatprep.mubr.f32.mxu0 %v447
        %875 = vmatmul.mubr.f32.gmra.mxu0 %v446
        %v876 = vpop.f32.mrf.mxu0
        %v877 = vadd.f32 0.0, %v876
        %v878 = vpop.f32.mrf.mxu0
        %v879 = vadd.f32 0.0, %v878
        %880 = vmatprep.mubr.f32.mxu0 %v449
        %881 = vmatmul.mubr.f32.gmra.mxu0 %v448
        %v882 = vpop.f32.mrf.mxu0
        %v883 = vadd.f32 0.0, %v882
        %v884 = vpop.f32.mrf.mxu0
        %v885 = vadd.f32 0.0, %v884
        %886 = vmatprep.mubr.f32.mxu0 %v451
        %887 = vmatmul.mubr.f32.gmra.mxu0 %v450
        %v888 = vpop.f32.mrf.mxu0
        %v889 = vadd.f32 0.0, %v888
        %v890 = vpop.f32.mrf.mxu0
        %v891 = vadd.f32 0.0, %v890
        %892 = vmatprep.mubr.f32.mxu0 %v453
        %893 = vmatmul.mubr.f32.gmra.mxu0 %v452
        %v894 = vpop.f32.mrf.mxu0
        %v895 = vadd.f32 0.0, %v894
        %v896 = vpop.f32.mrf.mxu0
        %v897 = vadd.f32 0.0, %v896
        %898 = vmatprep.mubr.f32.mxu0 %v455
        %899 = vmatmul.mubr.f32.gmra.mxu0 %v454
        %v900 = vpop.f32.mrf.mxu0
        %v901 = vadd.f32 0.0, %v900
        %v902 = vpop.f32.mrf.mxu0
        %v903 = vadd.f32 0.0, %v902
        %904 = vmatprep.mubr.f32.mxu0 %v457
        %905 = vmatmul.mubr.f32.gmra.mxu0 %v456
        %v906 = vpop.f32.mrf.mxu0
        %v907 = vadd.f32 0.0, %v906
        %v908 = vpop.f32.mrf.mxu0
        %v909 = vadd.f32 0.0, %v908
        %910 = vmatprep.mubr.f32.mxu0 %v459
        %911 = vmatmul.mubr.f32.gmra.mxu0 %v458
        %v912 = vpop.f32.mrf.mxu0
        %v913 = vadd.f32 0.0, %v912
        %v914 = vpop.f32.mrf.mxu0
        %v915 = vadd.f32 0.0, %v914
        %916 = vmatprep.mubr.f32.mxu0 %v461
        %917 = vmatmul.mubr.f32.gmra.mxu0 %v460
        %v918 = vpop.f32.mrf.mxu0
        %v919 = vadd.f32 0.0, %v918
        %v920 = vpop.f32.mrf.mxu0
        %v921 = vadd.f32 0.0, %v920
        %922 = vmatprep.mubr.f32.mxu0 %v463
        %923 = vmatmul.mubr.f32.gmra.mxu0 %v462
        %v924 = vpop.f32.mrf.mxu0
        %v925 = vadd.f32 0.0, %v924
        %v926 = vpop.f32.mrf.mxu0
        %v927 = vadd.f32 0.0, %v926
        %928 = vmatprep.mubr.f32.mxu0 %v465
        %929 = vmatmul.mubr.f32.gmra.mxu0 %v464
        %v930 = vpop.f32.mrf.mxu0
        %v931 = vadd.f32 0.0, %v930
        %v932 = vpop.f32.mrf.mxu0
        %v933 = vadd.f32 0.0, %v932
        %934 = vmatprep.mubr.f32.mxu0 %v467
        %935 = vmatmul.mubr.f32.gmra.mxu0 %v466
        %v936 = vpop.f32.mrf.mxu0
        %v937 = vadd.f32 0.0, %v936
        %v938 = vpop.f32.mrf.mxu0
        %v939 = vadd.f32 0.0, %v938
        %940 = vmatprep.mubr.f32.mxu0 %v469
        %941 = vmatmul.mubr.f32.gmra.mxu0 %v468
        %v942 = vpop.f32.mrf.mxu0
        %v943 = vadd.f32 0.0, %v942
        %v944 = vpop.f32.mrf.mxu0
        %v945 = vadd.f32 0.0, %v944
        %946 = vmatprep.mubr.f32.mxu0 %v471
        %947 = vmatmul.mubr.f32.gmra.mxu0 %v470
        %v948 = vpop.f32.mrf.mxu0
        %v949 = vadd.f32 0.0, %v948
        %v950 = vpop.f32.mrf.mxu0
        %v951 = vadd.f32 0.0, %v950
        %952 = vmatprep.mubr.f32.mxu0 %v473
        %953 = vmatmul.mubr.f32.gmra.mxu0 %v472
        %v954 = vpop.f32.mrf.mxu0
        %v955 = vadd.f32 0.0, %v954
        %v956 = vpop.f32.mrf.mxu0
        %v957 = vadd.f32 0.0, %v956
        %958 = vmatprep.mubr.f32.mxu0 %v475
        %959 = vmatmul.mubr.f32.gmra.mxu0 %v474
        %v960 = vpop.f32.mrf.mxu0
        %v961 = vadd.f32 0.0, %v960
        %v962 = vpop.f32.mrf.mxu0
        %v963 = vadd.f32 0.0, %v962
        %964 = vmatprep.mubr.f32.mxu0 %v477
        %965 = vmatmul.mubr.f32.gmra.mxu0 %v476
        %v966 = vpop.f32.mrf.mxu0
        %v967 = vadd.f32 0.0, %v966
        %v968 = vpop.f32.mrf.mxu0
        %v969 = vadd.f32 0.0, %v968
        %970 = vmatprep.mubr.f32.mxu0 %v479
        %971 = vmatmul.mubr.f32.gmra.mxu0 %v478
        %v972 = vpop.f32.mrf.mxu0
        %v973 = vadd.f32 0.0, %v972
        %v974 = vpop.f32.mrf.mxu0
        %v975 = vadd.f32 0.0, %v974
        %976 = vmatprep.mubr.f32.mxu0 %v481
        %977 = vmatmul.mubr.f32.gmra.mxu0 %v480
        %v978 = vpop.f32.mrf.mxu0
        %v979 = vadd.f32 0.0, %v978
        %v980 = vpop.f32.mrf.mxu0
        %v981 = vadd.f32 0.0, %v980
        %982 = vmatprep.mubr.f32.mxu0 %v483
        %983 = vmatmul.mubr.f32.gmra.mxu0 %v482
        %v984 = vpop.f32.mrf.mxu0
        %v985 = vadd.f32 0.0, %v984
        %v986 = vpop.f32.mrf.mxu0
        %v987 = vadd.f32 0.0, %v986
        %988 = vmatprep.mubr.f32.mxu0 %v485
        %989 = vmatmul.mubr.f32.gmra.mxu0 %v484
        %v990 = vpop.f32.mrf.mxu0
        %v991 = vadd.f32 0.0, %v990
        %v992 = vpop.f32.mrf.mxu0
        %v993 = vadd.f32 0.0, %v992
        %994 = vmatprep.mubr.f32.mxu0 %v487
        %995 = vmatmul.mubr.f32.gmra.mxu0 %v486
        %v996 = vpop.f32.mrf.mxu0
        %v997 = vadd.f32 0.0, %v996
        %v998 = vpop.f32.mrf.mxu0
        %v999 = vadd.f32 0.0, %v998
        %1000 = vdwg.mxu0
        %p1001 = scmp.eq.s32.totalorder %s33, 0
        %p1002 = scmp.eq.s32.totalorder %s34, 0
        %p1003 = pnand %p1001, %p1002
        %p1004 = pneg %p1003
        // Predicated region
        $region53: #{tpu_custom_call.1} parent=35 // pred_check
          _
        $region54: #{tpu_custom_call.1} parent=35 // pred_check_branch
          %1006 = sbr.rel (%p1003) target = $region56
        $region55: #{tpu_custom_call.1} parent=35 // pred_region
          %v1007 = vlaneseq
          %vm1008 = vcmp.ge.s32.totalorder %v1007, 0
          %vm1009 = vcmp.lt.s32.totalorder %v1007, 256
          %vm1010 = vmand %vm1008, %vm1009
          %1011 = vst.msk [vmem:[#allocation2] sm:$0x3] %vm1010, 0.0
          %1012 = vst.msk [vmem:[#allocation3] sm:$0x3] %vm1010, 0.0
        $region56: #{tpu_custom_call.1} parent=35 // pred_fallthru
          _
        // Predicated region
        $region57: #{tpu_custom_call.1} parent=35 // pred_check
          %p1013 = pneg %p1001
        $region58: #{tpu_custom_call.1} parent=35 // pred_check_branch
          %1015 = sbr.rel (%p1013) target = $region60
        $region59: #{tpu_custom_call.1} parent=35 // pred_region
          %v1016 = vld [vmem:[#allocation2] sm:$0x3]
          %v1017 = vadd.f32 %v619, %v625
          %v1018 = vadd.f32 %v1017, %v631
          %v1019 = vadd.f32 %v1018, %v637
          %v1020 = vadd.f32 %v1019, %v643
          %v1021 = vadd.f32 %v1020, %v649
          %v1022 = vadd.f32 %v1021, %v655
          %v1023 = vadd.f32 %v1022, %v661
          %v1024 = vadd.f32 %v1023, %v667
          %v1025 = vadd.f32 %v1024, %v673
          %v1026 = vadd.f32 %v1025, %v679
          %v1027 = vadd.f32 %v1026, %v685
          %v1028 = vadd.f32 %v1027, %v691
          %v1029 = vadd.f32 %v1028, %v697
          %v1030 = vadd.f32 %v1029, %v703
          %v1031 = vadd.f32 %v1030, %v709
          %v1032 = vadd.f32 %v1031, %v715
          %v1033 = vadd.f32 %v1032, %v721
          %v1034 = vadd.f32 %v1033, %v727
          %v1035 = vadd.f32 %v1034, %v733
          %v1036 = vadd.f32 %v1035, %v739
          %v1037 = vadd.f32 %v1036, %v745
          %v1038 = vadd.f32 %v1037, %v751
          %v1039 = vadd.f32 %v1038, %v757
          %v1040 = vadd.f32 %v1039, %v763
          %v1041 = vadd.f32 %v1040, %v769
          %v1042 = vadd.f32 %v1041, %v775
          %v1043 = vadd.f32 %v1042, %v781
          %v1044 = vadd.f32 %v1043, %v787
          %v1045 = vadd.f32 %v1044, %v793
          %v1046 = vadd.f32 %v1045, %v799
          %v1047 = vadd.f32 %v1046, %v805
          %v1048 = vadd.f32 %v1047, %v811
          %v1049 = vadd.f32 %v1048, %v817
          %v1050 = vadd.f32 %v1049, %v823
          %v1051 = vadd.f32 %v1050, %v829
          %v1052 = vadd.f32 %v1051, %v835
          %v1053 = vadd.f32 %v1052, %v841
          %v1054 = vadd.f32 %v1053, %v847
          %v1055 = vadd.f32 %v1054, %v853
          %v1056 = vadd.f32 %v1055, %v859
          %v1057 = vadd.f32 %v1056, %v865
          %v1058 = vadd.f32 %v1057, %v871
          %v1059 = vadd.f32 %v1058, %v877
          %v1060 = vadd.f32 %v1059, %v883
          %v1061 = vadd.f32 %v1060, %v889
          %v1062 = vadd.f32 %v1061, %v895
          %v1063 = vadd.f32 %v1062, %v901
          %v1064 = vadd.f32 %v1063, %v907
          %v1065 = vadd.f32 %v1064, %v913
          %v1066 = vadd.f32 %v1065, %v919
          %v1067 = vadd.f32 %v1066, %v925
          %v1068 = vadd.f32 %v1067, %v931
          %v1069 = vadd.f32 %v1068, %v937
          %v1070 = vadd.f32 %v1069, %v943
          %v1071 = vadd.f32 %v1070, %v949
          %v1072 = vadd.f32 %v1071, %v955
          %v1073 = vadd.f32 %v1072, %v961
          %v1074 = vadd.f32 %v1073, %v967
          %v1075 = vadd.f32 %v1074, %v973
          %v1076 = vadd.f32 %v1075, %v979
          %v1077 = vadd.f32 %v1076, %v985
          %v1078 = vadd.f32 %v1077, %v991
          %v1079 = vadd.f32 %v1078, %v997
          %v1080 = vrot.slane %v1079, 4
          %v1081 = vadd.f32 %v1079, %v1080
          %v1082 = vrot.slane %v1081, 2
          %v1083 = vadd.f32 %v1081, %v1082
          %v1084 = vrot.slane %v1083, 1
          %v1085 = vadd.f32 %v1083, %v1084
          %v1086 = vadd.f32 %v621, %v627
          %v1087 = vadd.f32 %v1086, %v633
          %v1088 = vadd.f32 %v1087, %v639
          %v1089 = vadd.f32 %v1088, %v645
          %v1090 = vadd.f32 %v1089, %v651
          %v1091 = vadd.f32 %v1090, %v657
          %v1092 = vadd.f32 %v1091, %v663
          %v1093 = vadd.f32 %v1092, %v669
          %v1094 = vadd.f32 %v1093, %v675
          %v1095 = vadd.f32 %v1094, %v681
          %v1096 = vadd.f32 %v1095, %v687
          %v1097 = vadd.f32 %v1096, %v693
          %v1098 = vadd.f32 %v1097, %v699
          %v1099 = vadd.f32 %v1098, %v705
          %v1100 = vadd.f32 %v1099, %v711
          %v1101 = vadd.f32 %v1100, %v717
          %v1102 = vadd.f32 %v1101, %v723
          %v1103 = vadd.f32 %v1102, %v729
          %v1104 = vadd.f32 %v1103, %v735
          %v1105 = vadd.f32 %v1104, %v741
          %v1106 = vadd.f32 %v1105, %v747
          %v1107 = vadd.f32 %v1106, %v753
          %v1108 = vadd.f32 %v1107, %v759
          %v1109 = vadd.f32 %v1108, %v765
          %v1110 = vadd.f32 %v1109, %v771
          %v1111 = vadd.f32 %v1110, %v777
          %v1112 = vadd.f32 %v1111, %v783
          %v1113 = vadd.f32 %v1112, %v789
          %v1114 = vadd.f32 %v1113, %v795
          %v1115 = vadd.f32 %v1114, %v801
          %v1116 = vadd.f32 %v1115, %v807
          %v1117 = vadd.f32 %v1116, %v813
          %v1118 = vadd.f32 %v1117, %v819
          %v1119 = vadd.f32 %v1118, %v825
          %v1120 = vadd.f32 %v1119, %v831
          %v1121 = vadd.f32 %v1120, %v837
          %v1122 = vadd.f32 %v1121, %v843
          %v1123 = vadd.f32 %v1122, %v849
          %v1124 = vadd.f32 %v1123, %v855
          %v1125 = vadd.f32 %v1124, %v861
          %v1126 = vadd.f32 %v1125, %v867
          %v1127 = vadd.f32 %v1126, %v873
          %v1128 = vadd.f32 %v1127, %v879
          %v1129 = vadd.f32 %v1128, %v885
          %v1130 = vadd.f32 %v1129, %v891
          %v1131 = vadd.f32 %v1130, %v897
          %v1132 = vadd.f32 %v1131, %v903
          %v1133 = vadd.f32 %v1132, %v909
          %v1134 = vadd.f32 %v1133, %v915
          %v1135 = vadd.f32 %v1134, %v921
          %v1136 = vadd.f32 %v1135, %v927
          %v1137 = vadd.f32 %v1136, %v933
          %v1138 = vadd.f32 %v1137, %v939
          %v1139 = vadd.f32 %v1138, %v945
          %v1140 = vadd.f32 %v1139, %v951
          %v1141 = vadd.f32 %v1140, %v957
          %v1142 = vadd.f32 %v1141, %v963
          %v1143 = vadd.f32 %v1142, %v969
          %v1144 = vadd.f32 %v1143, %v975
          %v1145 = vadd.f32 %v1144, %v981
          %v1146 = vadd.f32 %v1145, %v987
          %v1147 = vadd.f32 %v1146, %v993
          %v1148 = vadd.f32 %v1147, %v999
          %v1149 = vrot.slane %v1148, 4
          %v1150 = vadd.f32 %v1148, %v1149
          %v1151 = vrot.slane %v1150, 2
          %v1152 = vadd.f32 %v1150, %v1151
          %v1153 = vrot.slane %v1152, 1
          %v1154 = vadd.f32 %v1152, %v1153
          %v1157 = vcombine.low %v1085, %v1154
          %v1159 = vunpack.c.l.s4 1966171168
          %v1160 = vunpack.c.0.s8 %v1159
          %v1161 = vlaneseq
          %v1162 = vshrl.u32 %v1161, 7
          %v1163 = vsub.s32 %v1160, %v1162
          %v1164 = vrot.slane %v1157, %v1163
          %v1166 = vunpack.c.l.s4 1966171168
          %v1167 = vunpack.c.0.s8 %v1166
          %v1168 = vlaneseq
          %v1169 = vshrl.u32 %v1168, 7
          %v1170 = vsub.s32 %v1167, %v1169
          %v1171 = vrot.slane %v1164, %v1170
          %v1173 = vadd.f32 %v1016, %v1171
          %v1174 = vlaneseq
          %vm1175 = vcmp.ge.s32.totalorder %v1174, 0
          %vm1176 = vcmp.lt.s32.totalorder %v1174, 256
          %vm1177 = vmand %vm1175, %vm1176
          %1178 = vst.msk [vmem:[#allocation2] sm:$0x3] %vm1177, %v1173
          %v1179 = vld [vmem:[#allocation3] sm:$0x3]
          %v1180 = vmul.f32 %v619, %v619
          %v1181 = vmul.f32 %v621, %v621
          %v1182 = vmul.f32 %v625, %v625
          %v1183 = vmul.f32 %v627, %v627
          %v1184 = vmul.f32 %v631, %v631
          %v1185 = vmul.f32 %v633, %v633
          %v1186 = vmul.f32 %v637, %v637
          %v1187 = vmul.f32 %v639, %v639
          %v1188 = vmul.f32 %v643, %v643
          %v1189 = vmul.f32 %v645, %v645
          %v1190 = vmul.f32 %v649, %v649
          %v1191 = vmul.f32 %v651, %v651
          %v1192 = vmul.f32 %v655, %v655
          %v1193 = vmul.f32 %v657, %v657
          %v1194 = vmul.f32 %v661, %v661
          %v1195 = vmul.f32 %v663, %v663
          %v1196 = vmul.f32 %v667, %v667
          %v1197 = vmul.f32 %v669, %v669
          %v1198 = vmul.f32 %v673, %v673
          %v1199 = vmul.f32 %v675, %v675
          %v1200 = vmul.f32 %v679, %v679
          %v1201 = vmul.f32 %v681, %v681
          %v1202 = vmul.f32 %v685, %v685
          %v1203 = vmul.f32 %v687, %v687
          %v1204 = vmul.f32 %v691, %v691
          %v1205 = vmul.f32 %v693, %v693
          %v1206 = vmul.f32 %v697, %v697
          %v1207 = vmul.f32 %v699, %v699
          %v1208 = vmul.f32 %v703, %v703
          %v1209 = vmul.f32 %v705, %v705
          %v1210 = vmul.f32 %v709, %v709
          %v1211 = vmul.f32 %v711, %v711
          %v1212 = vmul.f32 %v715, %v715
          %v1213 = vmul.f32 %v717, %v717
          %v1214 = vmul.f32 %v721, %v721
          %v1215 = vmul.f32 %v723, %v723
          %v1216 = vmul.f32 %v727, %v727
          %v1217 = vmul.f32 %v729, %v729
          %v1218 = vmul.f32 %v733, %v733
          %v1219 = vmul.f32 %v735, %v735
          %v1220 = vmul.f32 %v739, %v739
          %v1221 = vmul.f32 %v741, %v741
          %v1222 = vmul.f32 %v745, %v745
          %v1223 = vmul.f32 %v747, %v747
          %v1224 = vmul.f32 %v751, %v751
          %v1225 = vmul.f32 %v753, %v753
          %v1226 = vmul.f32 %v757, %v757
          %v1227 = vmul.f32 %v759, %v759
          %v1228 = vmul.f32 %v763, %v763
          %v1229 = vmul.f32 %v765, %v765
          %v1230 = vmul.f32 %v769, %v769
          %v1231 = vmul.f32 %v771, %v771
          %v1232 = vmul.f32 %v775, %v775
          %v1233 = vmul.f32 %v777, %v777
          %v1234 = vmul.f32 %v781, %v781
          %v1235 = vmul.f32 %v783, %v783
          %v1236 = vmul.f32 %v787, %v787
          %v1237 = vmul.f32 %v789, %v789
          %v1238 = vmul.f32 %v793, %v793
          %v1239 = vmul.f32 %v795, %v795
          %v1240 = vmul.f32 %v799, %v799
          %v1241 = vmul.f32 %v801, %v801
          %v1242 = vmul.f32 %v805, %v805
          %v1243 = vmul.f32 %v807, %v807
          %v1244 = vmul.f32 %v811, %v811
          %v1245 = vmul.f32 %v813, %v813
          %v1246 = vmul.f32 %v817, %v817
          %v1247 = vmul.f32 %v819, %v819
          %v1248 = vmul.f32 %v823, %v823
          %v1249 = vmul.f32 %v825, %v825
          %v1250 = vmul.f32 %v829, %v829
          %v1251 = vmul.f32 %v831, %v831
          %v1252 = vmul.f32 %v835, %v835
          %v1253 = vmul.f32 %v837, %v837
          %v1254 = vmul.f32 %v841, %v841
          %v1255 = vmul.f32 %v843, %v843
          %v1256 = vmul.f32 %v847, %v847
          %v1257 = vmul.f32 %v849, %v849
          %v1258 = vmul.f32 %v853, %v853
          %v1259 = vmul.f32 %v855, %v855
          %v1260 = vmul.f32 %v859, %v859
          %v1261 = vmul.f32 %v861, %v861
          %v1262 = vmul.f32 %v865, %v865
          %v1263 = vmul.f32 %v867, %v867
          %v1264 = vmul.f32 %v871, %v871
          %v1265 = vmul.f32 %v873, %v873
          %v1266 = vmul.f32 %v877, %v877
          %v1267 = vmul.f32 %v879, %v879
          %v1268 = vmul.f32 %v883, %v883
          %v1269 = vmul.f32 %v885, %v885
          %v1270 = vmul.f32 %v889, %v889
          %v1271 = vmul.f32 %v891, %v891
          %v1272 = vmul.f32 %v895, %v895
          %v1273 = vmul.f32 %v897, %v897
          %v1274 = vmul.f32 %v901, %v901
          %v1275 = vmul.f32 %v903, %v903
          %v1276 = vmul.f32 %v907, %v907
          %v1277 = vmul.f32 %v909, %v909
          %v1278 = vmul.f32 %v913, %v913
          %v1279 = vmul.f32 %v915, %v915
          %v1280 = vmul.f32 %v919, %v919
          %v1281 = vmul.f32 %v921, %v921
          %v1282 = vmul.f32 %v925, %v925
          %v1283 = vmul.f32 %v927, %v927
          %v1284 = vmul.f32 %v931, %v931
          %v1285 = vmul.f32 %v933, %v933
          %v1286 = vmul.f32 %v937, %v937
          %v1287 = vmul.f32 %v939, %v939
          %v1288 = vmul.f32 %v943, %v943
          %v1289 = vmul.f32 %v945, %v945
          %v1290 = vmul.f32 %v949, %v949
          %v1291 = vmul.f32 %v951, %v951
          %v1292 = vmul.f32 %v955, %v955
          %v1293 = vmul.f32 %v957, %v957
          %v1294 = vmul.f32 %v961, %v961
          %v1295 = vmul.f32 %v963, %v963
          %v1296 = vmul.f32 %v967, %v967
          %v1297 = vmul.f32 %v969, %v969
          %v1298 = vmul.f32 %v973, %v973
          %v1299 = vmul.f32 %v975, %v975
          %v1300 = vmul.f32 %v979, %v979
          %v1301 = vmul.f32 %v981, %v981
          %v1302 = vmul.f32 %v985, %v985
          %v1303 = vmul.f32 %v987, %v987
          %v1304 = vmul.f32 %v991, %v991
          %v1305 = vmul.f32 %v993, %v993
          %v1306 = vmul.f32 %v997, %v997
          %v1307 = vmul.f32 %v999, %v999
          %v1308 = vadd.f32 %v1180, %v1182
          %v1309 = vadd.f32 %v1308, %v1184
          %v1310 = vadd.f32 %v1309, %v1186
          %v1311 = vadd.f32 %v1310, %v1188
          %v1312 = vadd.f32 %v1311, %v1190
          %v1313 = vadd.f32 %v1312, %v1192
          %v1314 = vadd.f32 %v1313, %v1194
          %v1315 = vadd.f32 %v1314, %v1196
          %v1316 = vadd.f32 %v1315, %v1198
          %v1317 = vadd.f32 %v1316, %v1200
          %v1318 = vadd.f32 %v1317, %v1202
          %v1319 = vadd.f32 %v1318, %v1204
          %v1320 = vadd.f32 %v1319, %v1206
          %v1321 = vadd.f32 %v1320, %v1208
          %v1322 = vadd.f32 %v1321, %v1210
          %v1323 = vadd.f32 %v1322, %v1212
          %v1324 = vadd.f32 %v1323, %v1214
          %v1325 = vadd.f32 %v1324, %v1216
          %v1326 = vadd.f32 %v1325, %v1218
          %v1327 = vadd.f32 %v1326, %v1220
          %v1328 = vadd.f32 %v1327, %v1222
          %v1329 = vadd.f32 %v1328, %v1224
          %v1330 = vadd.f32 %v1329, %v1226
          %v1331 = vadd.f32 %v1330, %v1228
          %v1332 = vadd.f32 %v1331, %v1230
          %v1333 = vadd.f32 %v1332, %v1232
          %v1334 = vadd.f32 %v1333, %v1234
          %v1335 = vadd.f32 %v1334, %v1236
          %v1336 = vadd.f32 %v1335, %v1238
          %v1337 = vadd.f32 %v1336, %v1240
          %v1338 = vadd.f32 %v1337, %v1242
          %v1339 = vadd.f32 %v1338, %v1244
          %v1340 = vadd.f32 %v1339, %v1246
          %v1341 = vadd.f32 %v1340, %v1248
          %v1342 = vadd.f32 %v1341, %v1250
          %v1343 = vadd.f32 %v1342, %v1252
          %v1344 = vadd.f32 %v1343, %v1254
          %v1345 = vadd.f32 %v1344, %v1256
          %v1346 = vadd.f32 %v1345, %v1258
          %v1347 = vadd.f32 %v1346, %v1260
          %v1348 = vadd.f32 %v1347, %v1262
          %v1349 = vadd.f32 %v1348, %v1264
          %v1350 = vadd.f32 %v1349, %v1266
          %v1351 = vadd.f32 %v1350, %v1268
          %v1352 = vadd.f32 %v1351, %v1270
          %v1353 = vadd.f32 %v1352, %v1272
          %v1354 = vadd.f32 %v1353, %v1274
          %v1355 = vadd.f32 %v1354, %v1276
          %v1356 = vadd.f32 %v1355, %v1278
          %v1357 = vadd.f32 %v1356, %v1280
          %v1358 = vadd.f32 %v1357, %v1282
          %v1359 = vadd.f32 %v1358, %v1284
          %v1360 = vadd.f32 %v1359, %v1286
          %v1361 = vadd.f32 %v1360, %v1288
          %v1362 = vadd.f32 %v1361, %v1290
          %v1363 = vadd.f32 %v1362, %v1292
          %v1364 = vadd.f32 %v1363, %v1294
          %v1365 = vadd.f32 %v1364, %v1296
          %v1366 = vadd.f32 %v1365, %v1298
          %v1367 = vadd.f32 %v1366, %v1300
          %v1368 = vadd.f32 %v1367, %v1302
          %v1369 = vadd.f32 %v1368, %v1304
          %v1370 = vadd.f32 %v1369, %v1306
          %v1371 = vrot.slane %v1370, 4
          %v1372 = vadd.f32 %v1370, %v1371
          %v1373 = vrot.slane %v1372, 2
          %v1374 = vadd.f32 %v1372, %v1373
          %v1375 = vrot.slane %v1374, 1
          %v1376 = vadd.f32 %v1374, %v1375
          %v1377 = vadd.f32 %v1181, %v1183
          %v1378 = vadd.f32 %v1377, %v1185
          %v1379 = vadd.f32 %v1378, %v1187
          %v1380 = vadd.f32 %v1379, %v1189
          %v1381 = vadd.f32 %v1380, %v1191
          %v1382 = vadd.f32 %v1381, %v1193
          %v1383 = vadd.f32 %v1382, %v1195
          %v1384 = vadd.f32 %v1383, %v1197
          %v1385 = vadd.f32 %v1384, %v1199
          %v1386 = vadd.f32 %v1385, %v1201
          %v1387 = vadd.f32 %v1386, %v1203
          %v1388 = vadd.f32 %v1387, %v1205
          %v1389 = vadd.f32 %v1388, %v1207
          %v1390 = vadd.f32 %v1389, %v1209
          %v1391 = vadd.f32 %v1390, %v1211
          %v1392 = vadd.f32 %v1391, %v1213
          %v1393 = vadd.f32 %v1392, %v1215
          %v1394 = vadd.f32 %v1393, %v1217
          %v1395 = vadd.f32 %v1394, %v1219
          %v1396 = vadd.f32 %v1395, %v1221
          %v1397 = vadd.f32 %v1396, %v1223
          %v1398 = vadd.f32 %v1397, %v1225
          %v1399 = vadd.f32 %v1398, %v1227
          %v1400 = vadd.f32 %v1399, %v1229
          %v1401 = vadd.f32 %v1400, %v1231
          %v1402 = vadd.f32 %v1401, %v1233
          %v1403 = vadd.f32 %v1402, %v1235
          %v1404 = vadd.f32 %v1403, %v1237
          %v1405 = vadd.f32 %v1404, %v1239
          %v1406 = vadd.f32 %v1405, %v1241
          %v1407 = vadd.f32 %v1406, %v1243
          %v1408 = vadd.f32 %v1407, %v1245
          %v1409 = vadd.f32 %v1408, %v1247
          %v1410 = vadd.f32 %v1409, %v1249
          %v1411 = vadd.f32 %v1410, %v1251
          %v1412 = vadd.f32 %v1411, %v1253
          %v1413 = vadd.f32 %v1412, %v1255
          %v1414 = vadd.f32 %v1413, %v1257
          %v1415 = vadd.f32 %v1414, %v1259
          %v1416 = vadd.f32 %v1415, %v1261
          %v1417 = vadd.f32 %v1416, %v1263
          %v1418 = vadd.f32 %v1417, %v1265
          %v1419 = vadd.f32 %v1418, %v1267
          %v1420 = vadd.f32 %v1419, %v1269
          %v1421 = vadd.f32 %v1420, %v1271
          %v1422 = vadd.f32 %v1421, %v1273
          %v1423 = vadd.f32 %v1422, %v1275
          %v1424 = vadd.f32 %v1423, %v1277
          %v1425 = vadd.f32 %v1424, %v1279
          %v1426 = vadd.f32 %v1425, %v1281
          %v1427 = vadd.f32 %v1426, %v1283
          %v1428 = vadd.f32 %v1427, %v1285
          %v1429 = vadd.f32 %v1428, %v1287
          %v1430 = vadd.f32 %v1429, %v1289
          %v1431 = vadd.f32 %v1430, %v1291
          %v1432 = vadd.f32 %v1431, %v1293
          %v1433 = vadd.f32 %v1432, %v1295
          %v1434 = vadd.f32 %v1433, %v1297
          %v1435 = vadd.f32 %v1434, %v1299
          %v1436 = vadd.f32 %v1435, %v1301
          %v1437 = vadd.f32 %v1436, %v1303
          %v1438 = vadd.f32 %v1437, %v1305
          %v1439 = vadd.f32 %v1438, %v1307
          %v1440 = vrot.slane %v1439, 4
          %v1441 = vadd.f32 %v1439, %v1440
          %v1442 = vrot.slane %v1441, 2
          %v1443 = vadd.f32 %v1441, %v1442
          %v1444 = vrot.slane %v1443, 1
          %v1445 = vadd.f32 %v1443, %v1444
          %v1448 = vcombine.low %v1376, %v1445
          %v1450 = vunpack.c.l.s4 1966171168
          %v1451 = vunpack.c.0.s8 %v1450
          %v1452 = vlaneseq
          %v1453 = vshrl.u32 %v1452, 7
          %v1454 = vsub.s32 %v1451, %v1453
          %v1455 = vrot.slane %v1448, %v1454
          %v1457 = vunpack.c.l.s4 1966171168
          %v1458 = vunpack.c.0.s8 %v1457
          %v1459 = vlaneseq
          %v1460 = vshrl.u32 %v1459, 7
          %v1461 = vsub.s32 %v1458, %v1460
          %v1462 = vrot.slane %v1455, %v1461
          %v1464 = vadd.f32 %v1179, %v1462
          %1465 = vst.msk [vmem:[#allocation3] sm:$0x3] %vm1177, %v1464
        $region60: #{tpu_custom_call.1} parent=35 // pred_fallthru
          _
        %p1466 = scmp.eq.s32.totalorder %s33, 1
        %p1467 = pnand %p1466, %p1002
        %p1468 = pneg %p1467
        // Predicated region
        $region61: #{tpu_custom_call.1} parent=35 // pred_check
          _
        $region62: #{tpu_custom_call.1} parent=35 // pred_check_branch
          %1470 = sbr.rel (%p1467) target = $region64
        $region63: #{tpu_custom_call.1} parent=35 // pred_region
          %v1471 = vld [vmem:[#allocation2] sm:$0x3]
          %v1472 = vmul.f32 %v1471, 0.0012755102
          %v1473 = vld [vmem:[#allocation3] sm:$0x3]
          %v1474 = vmul.f32 %v1473, 0.0012755102
          %v1475 = vmul.f32 %v1472, %v1472
          %v1476 = vsub.f32 %v1474, %v1475
          %v1477 = vld [vmem:[%s304] sm:$0x3]
          %v1478 = vadd.f32 %v1476, 1e-05
          %v1479 = vrsqrt.pop %v1478
          %v1480 = vmul.f32 %v1477, %v1479
          %v1481 = vlaneseq
          %vm1482 = vcmp.ge.s32.totalorder %v1481, 0
          %vm1483 = vcmp.lt.s32.totalorder %v1481, 256
          %vm1484 = vmand %vm1482, %vm1483
          %1485 = vst.msk [vmem:[#allocation4] sm:$0x3] %vm1484, %v1480
          %v1486 = vld [vmem:[%s313] sm:$0x3]
          %v1487 = vmul.f32 %v1472, %v1480
          %v1488 = vsub.f32 %v1486, %v1487
          %1489 = vst.msk [vmem:[#allocation5] sm:$0x3] %vm1484, %v1488
        $region64: #{tpu_custom_call.1} parent=35 // pred_fallthru
          _
        // Predicated region
        $region65: #{tpu_custom_call.1} parent=35 // pred_check
          %p1490 = pneg %p1466
        $region66: #{tpu_custom_call.1} parent=35 // pred_check_branch
          %1492 = sbr.rel (%p1490) target = $region68
        $region67: #{tpu_custom_call.1} parent=35 // pred_region
          %v1493 = vld [vmem:[#allocation4] sm:$0x3]
          %v1495 = vlaneseq
          %v1496 = vshrl.u32 %v1495, 7
          %v1497 = vsub.s32 0, %v1496
          %v1498 = vrot.slane %v1493, %v1497
          %v1499 = vlaneseq
          %v1500 = vshrl.u32 %v1499, 7
          %v1501 = vsub.s32 1, %v1500
          %v1502 = vrot.slane %v1493, %v1501
          %v1505 = vmul.f32 %v619, %v1498
          %v1506 = vmul.f32 %v621, %v1502
          %v1507 = vmul.f32 %v625, %v1498
          %v1508 = vmul.f32 %v627, %v1502
          %v1509 = vmul.f32 %v631, %v1498
          %v1510 = vmul.f32 %v633, %v1502
          %v1511 = vmul.f32 %v637, %v1498
          %v1512 = vmul.f32 %v639, %v1502
          %v1513 = vmul.f32 %v643, %v1498
          %v1514 = vmul.f32 %v645, %v1502
          %v1515 = vmul.f32 %v649, %v1498
          %v1516 = vmul.f32 %v651, %v1502
          %v1517 = vmul.f32 %v655, %v1498
          %v1518 = vmul.f32 %v657, %v1502
          %v1519 = vmul.f32 %v661, %v1498
          %v1520 = vmul.f32 %v663, %v1502
          %v1521 = vmul.f32 %v667, %v1498
          %v1522 = vmul.f32 %v669, %v1502
          %v1523 = vmul.f32 %v673, %v1498
          %v1524 = vmul.f32 %v675, %v1502
          %v1525 = vmul.f32 %v679, %v1498
          %v1526 = vmul.f32 %v681, %v1502
          %v1527 = vmul.f32 %v685, %v1498
          %v1528 = vmul.f32 %v687, %v1502
          %v1529 = vmul.f32 %v691, %v1498
          %v1530 = vmul.f32 %v693, %v1502
          %v1531 = vmul.f32 %v697, %v1498
          %v1532 = vmul.f32 %v699, %v1502
          %v1533 = vmul.f32 %v703, %v1498
          %v1534 = vmul.f32 %v705, %v1502
          %v1535 = vmul.f32 %v709, %v1498
          %v1536 = vmul.f32 %v711, %v1502
          %v1537 = vmul.f32 %v715, %v1498
          %v1538 = vmul.f32 %v717, %v1502
          %v1539 = vmul.f32 %v721, %v1498
          %v1540 = vmul.f32 %v723, %v1502
          %v1541 = vmul.f32 %v727, %v1498
          %v1542 = vmul.f32 %v729, %v1502
          %v1543 = vmul.f32 %v733, %v1498
          %v1544 = vmul.f32 %v735, %v1502
          %v1545 = vmul.f32 %v739, %v1498
          %v1546 = vmul.f32 %v741, %v1502
          %v1547 = vmul.f32 %v745, %v1498
          %v1548 = vmul.f32 %v747, %v1502
          %v1549 = vmul.f32 %v751, %v1498
          %v1550 = vmul.f32 %v753, %v1502
          %v1551 = vmul.f32 %v757, %v1498
          %v1552 = vmul.f32 %v759, %v1502
          %v1553 = vmul.f32 %v763, %v1498
          %v1554 = vmul.f32 %v765, %v1502
          %v1555 = vmul.f32 %v769, %v1498
          %v1556 = vmul.f32 %v771, %v1502
          %v1557 = vmul.f32 %v775, %v1498
          %v1558 = vmul.f32 %v777, %v1502
          %v1559 = vmul.f32 %v781, %v1498
          %v1560 = vmul.f32 %v783, %v1502
          %v1561 = vmul.f32 %v787, %v1498
          %v1562 = vmul.f32 %v789, %v1502
          %v1563 = vmul.f32 %v793, %v1498
          %v1564 = vmul.f32 %v795, %v1502
          %v1565 = vmul.f32 %v799, %v1498
          %v1566 = vmul.f32 %v801, %v1502
          %v1567 = vmul.f32 %v805, %v1498
          %v1568 = vmul.f32 %v807, %v1502
          %v1569 = vmul.f32 %v811, %v1498
          %v1570 = vmul.f32 %v813, %v1502
          %v1571 = vmul.f32 %v817, %v1498
          %v1572 = vmul.f32 %v819, %v1502
          %v1573 = vmul.f32 %v823, %v1498
          %v1574 = vmul.f32 %v825, %v1502
          %v1575 = vmul.f32 %v829, %v1498
          %v1576 = vmul.f32 %v831, %v1502
          %v1577 = vmul.f32 %v835, %v1498
          %v1578 = vmul.f32 %v837, %v1502
          %v1579 = vmul.f32 %v841, %v1498
          %v1580 = vmul.f32 %v843, %v1502
          %v1581 = vmul.f32 %v847, %v1498
          %v1582 = vmul.f32 %v849, %v1502
          %v1583 = vmul.f32 %v853, %v1498
          %v1584 = vmul.f32 %v855, %v1502
          %v1585 = vmul.f32 %v859, %v1498
          %v1586 = vmul.f32 %v861, %v1502
          %v1587 = vmul.f32 %v865, %v1498
          %v1588 = vmul.f32 %v867, %v1502
          %v1589 = vmul.f32 %v871, %v1498
          %v1590 = vmul.f32 %v873, %v1502
          %v1591 = vmul.f32 %v877, %v1498
          %v1592 = vmul.f32 %v879, %v1502
          %v1593 = vmul.f32 %v883, %v1498
          %v1594 = vmul.f32 %v885, %v1502
          %v1595 = vmul.f32 %v889, %v1498
          %v1596 = vmul.f32 %v891, %v1502
          %v1597 = vmul.f32 %v895, %v1498
          %v1598 = vmul.f32 %v897, %v1502
          %v1599 = vmul.f32 %v901, %v1498
          %v1600 = vmul.f32 %v903, %v1502
          %v1601 = vmul.f32 %v907, %v1498
          %v1602 = vmul.f32 %v909, %v1502
          %v1603 = vmul.f32 %v913, %v1498
          %v1604 = vmul.f32 %v915, %v1502
          %v1605 = vmul.f32 %v919, %v1498
          %v1606 = vmul.f32 %v921, %v1502
          %v1607 = vmul.f32 %v925, %v1498
          %v1608 = vmul.f32 %v927, %v1502
          %v1609 = vmul.f32 %v931, %v1498
          %v1610 = vmul.f32 %v933, %v1502
          %v1611 = vmul.f32 %v937, %v1498
          %v1612 = vmul.f32 %v939, %v1502
          %v1613 = vmul.f32 %v943, %v1498
          %v1614 = vmul.f32 %v945, %v1502
          %v1615 = vmul.f32 %v949, %v1498
          %v1616 = vmul.f32 %v951, %v1502
          %v1617 = vmul.f32 %v955, %v1498
          %v1618 = vmul.f32 %v957, %v1502
          %v1619 = vmul.f32 %v961, %v1498
          %v1620 = vmul.f32 %v963, %v1502
          %v1621 = vmul.f32 %v967, %v1498
          %v1622 = vmul.f32 %v969, %v1502
          %v1623 = vmul.f32 %v973, %v1498
          %v1624 = vmul.f32 %v975, %v1502
          %v1625 = vmul.f32 %v979, %v1498
          %v1626 = vmul.f32 %v981, %v1502
          %v1627 = vmul.f32 %v985, %v1498
          %v1628 = vmul.f32 %v987, %v1502
          %v1629 = vmul.f32 %v991, %v1498
          %v1630 = vmul.f32 %v993, %v1502
          %v1631 = vmul.f32 %v997, %v1498
          %v1632 = vmul.f32 %v999, %v1502
          %v1633 = vld [vmem:[#allocation5] sm:$0x3]
          %v1635 = vlaneseq
          %v1636 = vshrl.u32 %v1635, 7
          %v1637 = vsub.s32 0, %v1636
          %v1638 = vrot.slane %v1633, %v1637
          %v1639 = vlaneseq
          %v1640 = vshrl.u32 %v1639, 7
          %v1641 = vsub.s32 1, %v1640
          %v1642 = vrot.slane %v1633, %v1641
          %v1645 = vadd.f32 %v1505, %v1638
          %v1646 = vadd.f32 %v1506, %v1642
          %v1647 = vadd.f32 %v1507, %v1638
          %v1648 = vadd.f32 %v1508, %v1642
          %v1649 = vadd.f32 %v1509, %v1638
          %v1650 = vadd.f32 %v1510, %v1642
          %v1651 = vadd.f32 %v1511, %v1638
          %v1652 = vadd.f32 %v1512, %v1642
          %v1653 = vadd.f32 %v1513, %v1638
          %v1654 = vadd.f32 %v1514, %v1642
          %v1655 = vadd.f32 %v1515, %v1638
          %v1656 = vadd.f32 %v1516, %v1642
          %v1657 = vadd.f32 %v1517, %v1638
          %v1658 = vadd.f32 %v1518, %v1642
          %v1659 = vadd.f32 %v1519, %v1638
          %v1660 = vadd.f32 %v1520, %v1642
          %v1661 = vadd.f32 %v1521, %v1638
          %v1662 = vadd.f32 %v1522, %v1642
          %v1663 = vadd.f32 %v1523, %v1638
          %v1664 = vadd.f32 %v1524, %v1642
          %v1665 = vadd.f32 %v1525, %v1638
          %v1666 = vadd.f32 %v1526, %v1642
          %v1667 = vadd.f32 %v1527, %v1638
          %v1668 = vadd.f32 %v1528, %v1642
          %v1669 = vadd.f32 %v1529, %v1638
          %v1670 = vadd.f32 %v1530, %v1642
          %v1671 = vadd.f32 %v1531, %v1638
          %v1672 = vadd.f32 %v1532, %v1642
          %v1673 = vadd.f32 %v1533, %v1638
          %v1674 = vadd.f32 %v1534, %v1642
          %v1675 = vadd.f32 %v1535, %v1638
          %v1676 = vadd.f32 %v1536, %v1642
          %v1677 = vadd.f32 %v1537, %v1638
          %v1678 = vadd.f32 %v1538, %v1642
          %v1679 = vadd.f32 %v1539, %v1638
          %v1680 = vadd.f32 %v1540, %v1642
          %v1681 = vadd.f32 %v1541, %v1638
          %v1682 = vadd.f32 %v1542, %v1642
          %v1683 = vadd.f32 %v1543, %v1638
          %v1684 = vadd.f32 %v1544, %v1642
          %v1685 = vadd.f32 %v1545, %v1638
          %v1686 = vadd.f32 %v1546, %v1642
          %v1687 = vadd.f32 %v1547, %v1638
          %v1688 = vadd.f32 %v1548, %v1642
          %v1689 = vadd.f32 %v1549, %v1638
          %v1690 = vadd.f32 %v1550, %v1642
          %v1691 = vadd.f32 %v1551, %v1638
          %v1692 = vadd.f32 %v1552, %v1642
          %v1693 = vadd.f32 %v1553, %v1638
          %v1694 = vadd.f32 %v1554, %v1642
          %v1695 = vadd.f32 %v1555, %v1638
          %v1696 = vadd.f32 %v1556, %v1642
          %v1697 = vadd.f32 %v1557, %v1638
          %v1698 = vadd.f32 %v1558, %v1642
          %v1699 = vadd.f32 %v1559, %v1638
          %v1700 = vadd.f32 %v1560, %v1642
          %v1701 = vadd.f32 %v1561, %v1638
          %v1702 = vadd.f32 %v1562, %v1642
          %v1703 = vadd.f32 %v1563, %v1638
          %v1704 = vadd.f32 %v1564, %v1642
          %v1705 = vadd.f32 %v1565, %v1638
          %v1706 = vadd.f32 %v1566, %v1642
          %v1707 = vadd.f32 %v1567, %v1638
          %v1708 = vadd.f32 %v1568, %v1642
          %v1709 = vadd.f32 %v1569, %v1638
          %v1710 = vadd.f32 %v1570, %v1642
          %v1711 = vadd.f32 %v1571, %v1638
          %v1712 = vadd.f32 %v1572, %v1642
          %v1713 = vadd.f32 %v1573, %v1638
          %v1714 = vadd.f32 %v1574, %v1642
          %v1715 = vadd.f32 %v1575, %v1638
          %v1716 = vadd.f32 %v1576, %v1642
          %v1717 = vadd.f32 %v1577, %v1638
          %v1718 = vadd.f32 %v1578, %v1642
          %v1719 = vadd.f32 %v1579, %v1638
          %v1720 = vadd.f32 %v1580, %v1642
          %v1721 = vadd.f32 %v1581, %v1638
          %v1722 = vadd.f32 %v1582, %v1642
          %v1723 = vadd.f32 %v1583, %v1638
          %v1724 = vadd.f32 %v1584, %v1642
          %v1725 = vadd.f32 %v1585, %v1638
          %v1726 = vadd.f32 %v1586, %v1642
          %v1727 = vadd.f32 %v1587, %v1638
          %v1728 = vadd.f32 %v1588, %v1642
          %v1729 = vadd.f32 %v1589, %v1638
          %v1730 = vadd.f32 %v1590, %v1642
          %v1731 = vadd.f32 %v1591, %v1638
          %v1732 = vadd.f32 %v1592, %v1642
          %v1733 = vadd.f32 %v1593, %v1638
          %v1734 = vadd.f32 %v1594, %v1642
          %v1735 = vadd.f32 %v1595, %v1638
          %v1736 = vadd.f32 %v1596, %v1642
          %v1737 = vadd.f32 %v1597, %v1638
          %v1738 = vadd.f32 %v1598, %v1642
          %v1739 = vadd.f32 %v1599, %v1638
          %v1740 = vadd.f32 %v1600, %v1642
          %v1741 = vadd.f32 %v1601, %v1638
          %v1742 = vadd.f32 %v1602, %v1642
          %v1743 = vadd.f32 %v1603, %v1638
          %v1744 = vadd.f32 %v1604, %v1642
          %v1745 = vadd.f32 %v1605, %v1638
          %v1746 = vadd.f32 %v1606, %v1642
          %v1747 = vadd.f32 %v1607, %v1638
          %v1748 = vadd.f32 %v1608, %v1642
          %v1749 = vadd.f32 %v1609, %v1638
          %v1750 = vadd.f32 %v1610, %v1642
          %v1751 = vadd.f32 %v1611, %v1638
          %v1752 = vadd.f32 %v1612, %v1642
          %v1753 = vadd.f32 %v1613, %v1638
          %v1754 = vadd.f32 %v1614, %v1642
          %v1755 = vadd.f32 %v1615, %v1638
          %v1756 = vadd.f32 %v1616, %v1642
          %v1757 = vadd.f32 %v1617, %v1638
          %v1758 = vadd.f32 %v1618, %v1642
          %v1759 = vadd.f32 %v1619, %v1638
          %v1760 = vadd.f32 %v1620, %v1642
          %v1761 = vadd.f32 %v1621, %v1638
          %v1762 = vadd.f32 %v1622, %v1642
          %v1763 = vadd.f32 %v1623, %v1638
          %v1764 = vadd.f32 %v1624, %v1642
          %v1765 = vadd.f32 %v1625, %v1638
          %v1766 = vadd.f32 %v1626, %v1642
          %v1767 = vadd.f32 %v1627, %v1638
          %v1768 = vadd.f32 %v1628, %v1642
          %v1769 = vadd.f32 %v1629, %v1638
          %v1770 = vadd.f32 %v1630, %v1642
          %v1771 = vadd.f32 %v1631, %v1638
          %v1772 = vadd.f32 %v1632, %v1642
          %1773 = vst [vmem:[%s352] sm:$0xff] %v1645
          %1774 = vst [vmem:[%s352 + $0x8] sm:$0xff] %v1646
          %1775 = vst [vmem:[%s352 + $0x10] sm:$0xff] %v1647
          %1776 = vst [vmem:[%s352 + $0x18] sm:$0xff] %v1648
          %1777 = vst [vmem:[%s352 + $0x20] sm:$0xff] %v1649
          %1778 = vst [vmem:[%s352 + $0x28] sm:$0xff] %v1650
          %1779 = vst [vmem:[%s352 + $0x30] sm:$0xff] %v1651
          %1780 = vst [vmem:[%s352 + $0x38] sm:$0xff] %v1652
          %1781 = vst [vmem:[%s352 + $0x40] sm:$0xff] %v1653
          %1782 = vst [vmem:[%s352 + $0x48] sm:$0xff] %v1654
          %1783 = vst [vmem:[%s352 + $0x50] sm:$0xff] %v1655
          %1784 = vst [vmem:[%s352 + $0x58] sm:$0xff] %v1656
          %1785 = vst [vmem:[%s352 + $0x60] sm:$0xff] %v1657
          %1786 = vst [vmem:[%s352 + $0x68] sm:$0xff] %v1658
          %1787 = vst [vmem:[%s352 + $0x70] sm:$0xff] %v1659
          %1788 = vst [vmem:[%s352 + $0x78] sm:$0xff] %v1660
          %1789 = vst [vmem:[%s352 + $0x80] sm:$0xff] %v1661
          %1790 = vst [vmem:[%s352 + $0x88] sm:$0xff] %v1662
          %1791 = vst [vmem:[%s352 + $0x90] sm:$0xff] %v1663
          %1792 = vst [vmem:[%s352 + $0x98] sm:$0xff] %v1664
          %1793 = vst [vmem:[%s352 + $0xa0] sm:$0xff] %v1665
          %1794 = vst [vmem:[%s352 + $0xa8] sm:$0xff] %v1666
          %1795 = vst [vmem:[%s352 + $0xb0] sm:$0xff] %v1667
          %1796 = vst [vmem:[%s352 + $0xb8] sm:$0xff] %v1668
          %1797 = vst [vmem:[%s352 + $0xc0] sm:$0xff] %v1669
          %1798 = vst [vmem:[%s352 + $0xc8] sm:$0xff] %v1670
          %1799 = vst [vmem:[%s352 + $0xd0] sm:$0xff] %v1671
          %1800 = vst [vmem:[%s352 + $0xd8] sm:$0xff] %v1672
          %1801 = vst [vmem:[%s352 + $0xe0] sm:$0xff] %v1673
          %1802 = vst [vmem:[%s352 + $0xe8] sm:$0xff] %v1674
          %1803 = vst [vmem:[%s352 + $0xf0] sm:$0xff] %v1675
          %1804 = vst [vmem:[%s352 + $0xf8] sm:$0xff] %v1676
          %1805 = vst [vmem:[%s352 + $0x100] sm:$0xff] %v1677
          %1806 = vst [vmem:[%s352 + $0x108] sm:$0xff] %v1678
          %1807 = vst [vmem:[%s352 + $0x110] sm:$0xff] %v1679
          %1808 = vst [vmem:[%s352 + $0x118] sm:$0xff] %v1680
          %1809 = vst [vmem:[%s352 + $0x120] sm:$0xff] %v1681
          %1810 = vst [vmem:[%s352 + $0x128] sm:$0xff] %v1682
          %1811 = vst [vmem:[%s352 + $0x130] sm:$0xff] %v1683
          %1812 = vst [vmem:[%s352 + $0x138] sm:$0xff] %v1684
          %1813 = vst [vmem:[%s352 + $0x140] sm:$0xff] %v1685
          %1814 = vst [vmem:[%s352 + $0x148] sm:$0xff] %v1686
          %1815 = vst [vmem:[%s352 + $0x150] sm:$0xff] %v1687
          %1816 = vst [vmem:[%s352 + $0x158] sm:$0xff] %v1688
          %1817 = vst [vmem:[%s352 + $0x160] sm:$0xff] %v1689
          %1818 = vst [vmem:[%s352 + $0x168] sm:$0xff] %v1690
          %1819 = vst [vmem:[%s352 + $0x170] sm:$0xff] %v1691
          %1820 = vst [vmem:[%s352 + $0x178] sm:$0xff] %v1692
          %1821 = vst [vmem:[%s352 + $0x180] sm:$0xff] %v1693
          %1822 = vst [vmem:[%s352 + $0x188] sm:$0xff] %v1694
          %1823 = vst [vmem:[%s352 + $0x190] sm:$0xff] %v1695
          %1824 = vst [vmem:[%s352 + $0x198] sm:$0xff] %v1696
          %1825 = vst [vmem:[%s352 + $0x1a0] sm:$0xff] %v1697
          %1826 = vst [vmem:[%s352 + $0x1a8] sm:$0xff] %v1698
          %1827 = vst [vmem:[%s352 + $0x1b0] sm:$0xff] %v1699
          %1828 = vst [vmem:[%s352 + $0x1b8] sm:$0xff] %v1700
          %1829 = vst [vmem:[%s352 + $0x1c0] sm:$0xff] %v1701
          %1830 = vst [vmem:[%s352 + $0x1c8] sm:$0xff] %v1702
          %1831 = vst [vmem:[%s352 + $0x1d0] sm:$0xff] %v1703
          %1832 = vst [vmem:[%s352 + $0x1d8] sm:$0xff] %v1704
          %1833 = vst [vmem:[%s352 + $0x1e0] sm:$0xff] %v1705
          %1834 = vst [vmem:[%s352 + $0x1e8] sm:$0xff] %v1706
          %1835 = vst [vmem:[%s352 + $0x1f0] sm:$0xff] %v1707
          %1836 = vst [vmem:[%s352 + $0x1f8] sm:$0xff] %v1708
          %1837 = vst [vmem:[%s352 + $0x200] sm:$0xff] %v1709
          %1838 = vst [vmem:[%s352 + $0x208] sm:$0xff] %v1710
          %1839 = vst [vmem:[%s352 + $0x210] sm:$0xff] %v1711
          %1840 = vst [vmem:[%s352 + $0x218] sm:$0xff] %v1712
          %1841 = vst [vmem:[%s352 + $0x220] sm:$0xff] %v1713
          %1842 = vst [vmem:[%s352 + $0x228] sm:$0xff] %v1714
          %1843 = vst [vmem:[%s352 + $0x230] sm:$0xff] %v1715
          %1844 = vst [vmem:[%s352 + $0x238] sm:$0xff] %v1716
          %1845 = vst [vmem:[%s352 + $0x240] sm:$0xff] %v1717
          %1846 = vst [vmem:[%s352 + $0x248] sm:$0xff] %v1718
          %1847 = vst [vmem:[%s352 + $0x250] sm:$0xff] %v1719
          %1848 = vst [vmem:[%s352 + $0x258] sm:$0xff] %v1720
          %1849 = vst [vmem:[%s352 + $0x260] sm:$0xff] %v1721
          %1850 = vst [vmem:[%s352 + $0x268] sm:$0xff] %v1722
          %1851 = vst [vmem:[%s352 + $0x270] sm:$0xff] %v1723
          %1852 = vst [vmem:[%s352 + $0x278] sm:$0xff] %v1724
          %1853 = vst [vmem:[%s352 + $0x280] sm:$0xff] %v1725
          %1854 = vst [vmem:[%s352 + $0x288] sm:$0xff] %v1726
          %1855 = vst [vmem:[%s352 + $0x290] sm:$0xff] %v1727
          %1856 = vst [vmem:[%s352 + $0x298] sm:$0xff] %v1728
          %1857 = vst [vmem:[%s352 + $0x2a0] sm:$0xff] %v1729
          %1858 = vst [vmem:[%s352 + $0x2a8] sm:$0xff] %v1730
          %1859 = vst [vmem:[%s352 + $0x2b0] sm:$0xff] %v1731
          %1860 = vst [vmem:[%s352 + $0x2b8] sm:$0xff] %v1732
          %1861 = vst [vmem:[%s352 + $0x2c0] sm:$0xff] %v1733
          %1862 = vst [vmem:[%s352 + $0x2c8] sm:$0xff] %v1734
          %1863 = vst [vmem:[%s352 + $0x2d0] sm:$0xff] %v1735
          %1864 = vst [vmem:[%s352 + $0x2d8] sm:$0xff] %v1736
          %1865 = vst [vmem:[%s352 + $0x2e0] sm:$0xff] %v1737
          %1866 = vst [vmem:[%s352 + $0x2e8] sm:$0xff] %v1738
          %1867 = vst [vmem:[%s352 + $0x2f0] sm:$0xff] %v1739
          %1868 = vst [vmem:[%s352 + $0x2f8] sm:$0xff] %v1740
          %1869 = vst [vmem:[%s352 + $0x300] sm:$0xff] %v1741
          %1870 = vst [vmem:[%s352 + $0x308] sm:$0xff] %v1742
          %1871 = vst [vmem:[%s352 + $0x310] sm:$0xff] %v1743
          %1872 = vst [vmem:[%s352 + $0x318] sm:$0xff] %v1744
          %1873 = vst [vmem:[%s352 + $0x320] sm:$0xff] %v1745
          %1874 = vst [vmem:[%s352 + $0x328] sm:$0xff] %v1746
          %1875 = vst [vmem:[%s352 + $0x330] sm:$0xff] %v1747
          %1876 = vst [vmem:[%s352 + $0x338] sm:$0xff] %v1748
          %1877 = vst [vmem:[%s352 + $0x340] sm:$0xff] %v1749
          %1878 = vst [vmem:[%s352 + $0x348] sm:$0xff] %v1750
          %1879 = vst [vmem:[%s352 + $0x350] sm:$0xff] %v1751
          %1880 = vst [vmem:[%s352 + $0x358] sm:$0xff] %v1752
          %1881 = vst [vmem:[%s352 + $0x360] sm:$0xff] %v1753
          %1882 = vst [vmem:[%s352 + $0x368] sm:$0xff] %v1754
          %1883 = vst [vmem:[%s352 + $0x370] sm:$0xff] %v1755
          %1884 = vst [vmem:[%s352 + $0x378] sm:$0xff] %v1756
          %1885 = vst [vmem:[%s352 + $0x380] sm:$0xff] %v1757
          %1886 = vst [vmem:[%s352 + $0x388] sm:$0xff] %v1758
          %1887 = vst [vmem:[%s352 + $0x390] sm:$0xff] %v1759
          %1888 = vst [vmem:[%s352 + $0x398] sm:$0xff] %v1760
          %1889 = vst [vmem:[%s352 + $0x3a0] sm:$0xff] %v1761
          %1890 = vst [vmem:[%s352 + $0x3a8] sm:$0xff] %v1762
          %1891 = vst [vmem:[%s352 + $0x3b0] sm:$0xff] %v1763
          %1892 = vst [vmem:[%s352 + $0x3b8] sm:$0xff] %v1764
          %1893 = vst [vmem:[%s352 + $0x3c0] sm:$0xff] %v1765
          %1894 = vst [vmem:[%s352 + $0x3c8] sm:$0xff] %v1766
          %1895 = vst [vmem:[%s352 + $0x3d0] sm:$0xff] %v1767
          %1896 = vst [vmem:[%s352 + $0x3d8] sm:$0xff] %v1768
          %1897 = vst [vmem:[%s352 + $0x3e0] sm:$0xff] %v1769
          %1898 = vst [vmem:[%s352 + $0x3e8] sm:$0xff] %v1770
          %1899 = vst [vmem:[%s352 + $0x3f0] sm:$0xff] %v1771
          %1900 = vst [vmem:[%s352 + $0x3f8] sm:$0xff] %v1772
        $region68: #{tpu_custom_call.1} parent=35 // pred_fallthru
          _
        %s1901 = sand.u32 %s162, 1
        %s1902 = scalar_lea.sflag [#allocation8], %s1901
        %s1903 = sand.u32 %s162, 1
        %s1904 = smul.addr %s1903, 1024
        %s1905 = scalar_lea.vmem [#allocation14], %s1904
        // Predicated region
        $region69: #{tpu_custom_call.1} parent=35 // pred_check
          %p1906 = pneg %p172
        $region70: #{tpu_custom_call.1} parent=35 // pred_check_branch
          %1908 = sbr.rel (%p1906) target = $region72
        $region71: #{tpu_custom_call.1} parent=35 // pred_region
          %s1909 = smul.u32 %s34, %s33
          %s1910 = smul.u32 64, %s1909
          %s1911 = smul.u32 2, %s32
          %s1913 = ssub.s32 16384, 16384
          %1914 = vsyncadd %s1902, %s1913
          %s1915 = smul.addr %s1910, 8
          %s1916 = sadd.s32 %s1911, %s1915
          %s1917 = smul.addr %s1916, 128
          %s1918 = scalar_lea.hbm %s4, %s1917
          %s1919 = sshll.u32 %s1905, 4
          %s1920 = int_to_ptr.vmem [resolvable:$true] %s1919
          %1925 = dma.vmem_to_hbm [thread:$0]  %s1920, 16384, %s1918, %s1902, 256, 1024, 16
        $region72: #{tpu_custom_call.1} parent=35 // pred_fallthru
          _
      $region36: #{tpu_custom_call.1} parent=5 // pred_fallthru
        _
      %p1926 = scmp.le.s32.totalorder 2, %s22
      // Predicated region
      $region73: #{tpu_custom_call.1} parent=5 // pred_check
        %p1927 = pneg %p1926
      $region74: #{tpu_custom_call.1} parent=5 // pred_check_branch
        %1929 = sbr.rel (%p1927) target = $region76
      $region75: #{tpu_custom_call.1} parent=5 // pred_region
        %s1930 = ssub.s32 %s22, 2
        // Predicated region
        $region77: #{tpu_custom_call.1} parent=75 // pred_check
          %p1931 = pneg %p178
        $region78: #{tpu_custom_call.1} parent=75 // pred_check_branch
          %1933 = sbr.rel (%p1931) target = $region80
        $region79: #{tpu_custom_call.1} parent=75 // pred_region
          %s1934 = sand.u32 %s163, 1
          %s1935 = scalar_lea.sflag [#allocation8], %s1934
          %s1936 = sand.u32 %s163, 1
          %s1937 = smul.addr %s1936, 1024
          %s1938 = scalar_lea.vmem [#allocation14], %s1937
          %1939 = dma.done %s1935, 16384
        $region80: #{tpu_custom_call.1} parent=75 // pred_fallthru
          _
      $region76: #{tpu_custom_call.1} parent=5 // pred_fallthru
        _
    $region6: #{tpu_custom_call.1} parent=1 // loop_footer
      %s26 = sadd.s32 1, %s22
    $region7: #{tpu_custom_call.1} parent=1 // loop_footer_branch
      %21 = sbr.rel target = $region3
    $region8: #{tpu_custom_call.1} parent=1 // loop_exit
      _
    %1940 = vsyncpa [#allocation7], 1
    %s1941 = scalar_lea.sflag [#allocation7], 1
    %1942 = vsyncpa %s1941, 1
    %1943 = vsyncpa [#allocation10], 1
    %s1944 = scalar_lea.sflag [#allocation10], 1
    %1945 = vsyncpa %s1944, 1
    %1946 = vsyncpa [#allocation13], 1
    %s1947 = scalar_lea.sflag [#allocation13], 1
    %1948 = vsyncpa %s1947, 1
    %1949 = vsyncpa [#allocation8], 1
    %s1950 = scalar_lea.sflag [#allocation8], 1
    %1951 = vsyncpa %s1950, 1

</llo_original>
